<compile_context>
chip_gen: v6e
topology: v6e:2x2x1
jax: 0.10.0
libtpu: 0.0.40
codegen_flags: <defaults>
</compile_context>

<pallas_src>
import jax
import jax.numpy as jnp
from jax import lax
from jax.experimental import pallas as pl
from jax.experimental.pallas import tpu as pltpu


def _round_up(x, m):
    return ((x + m - 1) // m) * m


def _largest_divisor_leq(n, cap):
    t = max(1, min(n, int(cap)))
    while n % t:
        t -= 1
    return t


def _pick_time_chunk(S, Bt, Hp, budget_bytes=20 * 2**20):
    """Largest time chunk (dividing S, capped at 32) that fits a conservative
    VMEM budget.  TODO(synk): re-derive budget per TPU generation (v7x 64 MiB)."""
    per_t = (2 * Bt * Hp + 2 * Bt * Hp + Bt * 4 * Hp) * 4   # emb + out (dbl-buf) + pre scratch
    weights = 2 * 2 * Hp * 4 * Hp * 4                        # W_ih^T, W_hh^T (dbl-buf)
    cap = max(1, (budget_bytes - weights) // per_t)
    cap = max(1, min(cap, 32))                               # bound unroll size
    return _largest_divisor_leq(S, cap)


def _pad_gate_weights_T(w, H, Hp):
    """(4H, H) PyTorch LSTM weight [i;f;g;o]  ->  (Hp, 4Hp) transposed, gate-padded."""
    w_t = w.T.astype(jnp.float32)                            # (H, 4H)
    blocks = [jnp.pad(w_t[:, g * H:(g + 1) * H], ((0, Hp - H), (0, Hp - H)))
              for g in range(4)]
    return jnp.concatenate(blocks, axis=1)                   # (Hp, 4Hp)


def _pad_gate_bias(b, H, Hp):
    blocks = [jnp.pad(b[g * H:(g + 1) * H], (0, Hp - H)) for g in range(4)]
    return jnp.concatenate(blocks)[None, :].astype(jnp.float32)   # (1, 4Hp)


def _lstm_chunk_kernel(emb_ref, h0_ref, c0_ref, wih_ref, whh_ref, b_ref,
                       out_ref, hn_ref, cn_ref,
                       h_sc, c_sc, pre_sc):
    """One (batch-tile, time-chunk) grid step.

    emb_ref : (T, Bt, Hp)   embedded inputs for this chunk (streamed)
    h0_ref  : (1, Bt, Hp)   initial hidden state for this batch tile
    c0_ref  : (1, Bt, Hp)
    wih_ref : (Hp, 4Hp)     gate-padded W_ih^T   (VMEM resident)
    whh_ref : (Hp, 4Hp)     gate-padded W_hh^T   (VMEM resident)
    b_ref   : (1, 4Hp)      gate-padded b_ih + b_hh
    out_ref : (T, Bt, Hp)   output chunk
    hn_ref  : (1, Bt, Hp)   final hidden state (constant block idx along time)
    cn_ref  : (1, Bt, Hp)
    h_sc,c_sc : (Bt, Hp)    VMEM carry, persists across time chunks
    pre_sc  : (T, Bt, 4Hp)  per-chunk input-projection scratch
    """
    t_chunk = pl.program_id(1)
    T, Bt, Hp = out_ref.shape

    @pl.when(t_chunk == 0)
    def _():
        h_sc[...] = h0_ref[0]
        c_sc[...] = c0_ref[0]

    # Whole-chunk input projection: one MXU matmul, off the serial chain.
    x = emb_ref[...].reshape(T * Bt, Hp)
    pre = jnp.dot(x, wih_ref[...], preferred_element_type=jnp.float32) + b_ref[...]
    pre_sc[...] = pre.reshape(T, Bt, 4 * Hp)

    def step(t, carry):
        h, c = carry
        # Only the recurrent matmul sits on the serial critical path.
        gates = pre_sc[t] + jnp.dot(h.astype(whh_ref.dtype), whh_ref[...],
                                    preferred_element_type=jnp.float32)
        # PyTorch gate order: input, forget, cell(g), output — 128-lane aligned slices.
        i = jax.nn.sigmoid(gates[:, 0:Hp])
        f = jax.nn.sigmoid(gates[:, Hp:2 * Hp])
        g = jnp.tanh(gates[:, 2 * Hp:3 * Hp])
        o = jax.nn.sigmoid(gates[:, 3 * Hp:4 * Hp])
        c_new = f * c + i * g
        h_new = o * jnp.tanh(c_new)
        out_ref[t] = h_new
        return h_new, c_new

    # Short fixed trip count -> full unroll so the LLO scheduler sees the chain.
    h_fin, c_fin = lax.fori_loop(0, T, step, (h_sc[...], c_sc[...]), unroll=True)

    h_sc[...] = h_fin
    c_sc[...] = c_fin
    # Block index constant along the time axis -> only the last value reaches HBM.
    hn_ref[0] = h_fin
    cn_ref[0] = c_fin


def encoder_lstm_forward(input_src, hidden, params, *, time_chunk=None,
                         mxu_dtype=jnp.float32):
    """Pallas implementation of EncoderLSTM.forward (n_layers=1, bidir=False).

    input_src: (S, B) int32 token ids (time-major, batch_first=False)
    hidden:    (h0, c0), each (1, B, H) float32
    returns:   (output (S, B, H), (h_n, c_n))
    """
    h0, c0 = hidden
    H = params["embedding"].shape[1]
    S, B = input_src.shape

    # ---- performance padding ------------------------------------------------
    Hp = _round_up(H, 128)               # lane-dense gates / output stores
    Bt = min(_round_up(B, 8), 128)       # sublane-full batch tile (megacore splits on it)
    Bp = _round_up(B, Bt)

    # ---- glue: embedding gather + (identity) dropout in plain XLA -----------
    emb_table = jnp.pad(params["embedding"].astype(jnp.float32),
                        ((0, 0), (0, Hp - H)))
    tokens = jnp.pad(input_src, ((0, 0), (0, Bp - B)))        # pad batch with token 0
    embedded = emb_table[tokens].astype(mxu_dtype)            # (S, Bp, Hp)
    # Dropout(p=0) / eval mode is identity.
    # TODO(synk): stochastic dropout (p>0, training mode) not implemented.

    wih_tp = _pad_gate_weights_T(params["w_ih"], H, Hp).astype(mxu_dtype)  # (Hp, 4Hp)
    whh_tp = _pad_gate_weights_T(params["w_hh"], H, Hp).astype(mxu_dtype)  # (Hp, 4Hp)
    b_p = _pad_gate_bias(params["b_ih"] + params["b_hh"], H, Hp)           # (1, 4Hp)

    h0p = jnp.pad(h0.astype(jnp.float32), ((0, 0), (0, Bp - B), (0, Hp - H)))
    c0p = jnp.pad(c0.astype(jnp.float32), ((0, 0), (0, Bp - B), (0, Hp - H)))

    # ---- chunking ------------------------------------------------------------
    if time_chunk is None:
        time_chunk = _pick_time_chunk(S, Bt, Hp)
    T = _largest_divisor_leq(S, time_chunk)
    G = 4 * Hp
    elt = jnp.dtype(mxu_dtype).itemsize

    vmem_est = (2 * T * Bt * Hp * elt          # embedded double buffer
                + 2 * T * Bt * Hp * 4          # output double buffer
                + T * Bt * G * 4               # pre-gate scratch
                + 2 * 2 * Hp * G * elt         # W_ih^T / W_hh^T
                + 8 * Bt * Hp * 4 + 2 * G * 4)  # h0/c0/hn/cn/carries/bias
    compiler_params = pltpu.CompilerParams(
        dimension_semantics=("parallel", "arbitrary"),
        vmem_limit_bytes=int(min(max(2 * vmem_est, 32 * 2**20), 48 * 2**20)),
    )

    out_shapes = (
        jax.ShapeDtypeStruct((S, Bp, Hp), jnp.float32),        # output
        jax.ShapeDtypeStruct((1, Bp, Hp), jnp.float32),        # h_n
        jax.ShapeDtypeStruct((1, Bp, Hp), jnp.float32),        # c_n
    )

    grid_spec = pltpu.PrefetchScalarGridSpec(
        num_scalar_prefetch=0,
        grid=(Bp // Bt, S // T),
        in_specs=[
            pl.BlockSpec((T, Bt, Hp), lambda b, s: (s, b, 0)),   # embedded chunk
            pl.BlockSpec((1, Bt, Hp), lambda b, s: (0, b, 0)),   # h0
            pl.BlockSpec((1, Bt, Hp), lambda b, s: (0, b, 0)),   # c0
            pl.BlockSpec((Hp, G), lambda b, s: (0, 0)),          # W_ih^T
            pl.BlockSpec((Hp, G), lambda b, s: (0, 0)),          # W_hh^T
            pl.BlockSpec((1, G), lambda b, s: (0, 0)),           # bias
        ],
        out_specs=[
            pl.BlockSpec((T, Bt, Hp), lambda b, s: (s, b, 0)),   # output chunk
            pl.BlockSpec((1, Bt, Hp), lambda b, s: (0, b, 0)),   # h_n
            pl.BlockSpec((1, Bt, Hp), lambda b, s: (0, b, 0)),   # c_n
        ],
        scratch_shapes=[
            pltpu.VMEM((Bt, Hp), jnp.float32),                   # h carry
            pltpu.VMEM((Bt, Hp), jnp.float32),                   # c carry
            pltpu.VMEM((T, Bt, G), jnp.float32),                 # pre-gates
        ],
    )

    out_p, hn_p, cn_p = pl.pallas_call(
        _lstm_chunk_kernel,
        out_shape=out_shapes,
        grid_spec=grid_spec,
        compiler_params=compiler_params,
    )(embedded, h0p, c0p, wih_tp, whh_tp, b_p)

    output = out_p[:, :B, :H]
    h_n = hn_p[:, :B, :H]
    c_n = cn_p[:, :B, :H]
    return output, (h_n, c_n)


def _reference_forward(input_src, hidden, params):
    """Pure-JAX reference (mirrors torch.nn.LSTM semantics)."""
    h0, c0 = hidden
    H = params["embedding"].shape[1]
    emb = params["embedding"][input_src]           # (S, B, H)
    wih_t, whh_t = params["w_ih"].T, params["w_hh"].T
    b = params["b_ih"] + params["b_hh"]

    def step(carry, x):
        h, c = carry
        gates = x @ wih_t + h @ whh_t + b
        i = jax.nn.sigmoid(gates[:, 0:H])
        f = jax.nn.sigmoid(gates[:, H:2 * H])
        g = jnp.tanh(gates[:, 2 * H:3 * H])
        o = jax.nn.sigmoid(gates[:, 3 * H:4 * H])
        c = f * c + i * g
        h = o * jnp.tanh(c)
        return (h, c), h

    (hT, cT), ys = lax.scan(step, (h0[0], c0[0]), emb)
    return ys, (hT[None], cT[None])


def make_params(key, input_size, h_size):
    """Deterministic parameter init (matches PyTorch layer shapes)."""
    k_emb, k_wih, k_whh, k_bih, k_bhh = jax.random.split(key, 5)
    bound = 1.0 / jnp.sqrt(h_size)
    return {
        "embedding": jax.random.normal(k_emb, (input_size, h_size), jnp.float32),
        "w_ih": jax.random.uniform(k_wih, (4 * h_size, h_size), jnp.float32, -bound, bound),
        "w_hh": jax.random.uniform(k_whh, (4 * h_size, h_size), jnp.float32, -bound, bound),
        "b_ih": jax.random.uniform(k_bih, (4 * h_size,), jnp.float32, -bound, bound),
        "b_hh": jax.random.uniform(k_bhh, (4 * h_size,), jnp.float32, -bound, bound),
    }


if __name__ == "__main__":
    INPUT_SIZE = 16   # vocab size
    H_SIZE = 32       # hidden size (== embedding dim)
    BATCH = 2
    SEQ = 8

    key = jax.random.PRNGKey(0)
    k_params, k_tokens = jax.random.split(key)

    params = make_params(k_params, INPUT_SIZE, H_SIZE)
    input_src = jax.random.randint(k_tokens, (SEQ, BATCH), 0, INPUT_SIZE, jnp.int32)

    # init_hidden(): zeros of shape (num_layers*num_dir, batch, hidden)
    h0 = jnp.zeros((1, BATCH, H_SIZE), jnp.float32)
    c0 = jnp.zeros((1, BATCH, H_SIZE), jnp.float32)

    # time_chunk=4 -> two time chunks, exercising the chunked pipeline and
    # carry persistence across grid steps.
    out, (h_n, c_n) = encoder_lstm_forward(input_src, (h0, c0), params, time_chunk=4)
    jax.block_until_ready((out, h_n, c_n))

    ref_out, (ref_h, ref_c) = _reference_forward(input_src, (h0, c0), params)
    assert jnp.allclose(out, ref_out, atol=1e-5, rtol=1e-5)
    assert jnp.allclose(h_n, ref_h, atol=1e-5, rtol=1e-5)
    assert jnp.allclose(c_n, ref_c, atol=1e-5, rtol=1e-5)

    print("KERNEL_OK")
</pallas_src>

<mosaic_0001>
module attributes {stable_mosaic.version = 11 : i64} {
  func.func @_lstm_chunk_kernel(%arg0: i32, %arg1: i32, %arg2: memref<4x8x128xf32, #tpu.memory_space<vmem>>, %arg3: memref<1x8x128xf32, #tpu.memory_space<vmem>>, %arg4: memref<1x8x128xf32, #tpu.memory_space<vmem>>, %arg5: memref<128x512xf32, #tpu.memory_space<vmem>>, %arg6: memref<128x512xf32, #tpu.memory_space<vmem>>, %arg7: memref<1x512xf32, #tpu.memory_space<vmem>>, %arg8: memref<4x8x128xf32, #tpu.memory_space<vmem>>, %arg9: memref<1x8x128xf32, #tpu.memory_space<vmem>>, %arg10: memref<1x8x128xf32, #tpu.memory_space<vmem>>, %arg11: memref<8x128xf32, #tpu.memory_space<vmem>>, %arg12: memref<8x128xf32, #tpu.memory_space<vmem>>, %arg13: memref<4x8x512xf32, #tpu.memory_space<vmem>>) attributes {dimension_semantics = [#tpu.dimension_semantics<parallel>, #tpu.dimension_semantics<arbitrary>], iteration_bounds = array<i64: 1, 2>, scalar_prefetch = 0 : i64, scratch_operands = 3 : i64, tpu.core_type = #tpu.core_type<tc>, window_params = [{transform_indices = @transform_0, window_bounds = array<i64: 4, 8, 128>}, {transform_indices = @transform_1, window_bounds = array<i64: 1, 8, 128>}, {transform_indices = @transform_2, window_bounds = array<i64: 1, 8, 128>}, {pipeline_mode = #tpu.pipeline_mode<synchronous>, transform_indices = @transform_3, window_bounds = array<i64: 128, 512>}, {pipeline_mode = #tpu.pipeline_mode<synchronous>, transform_indices = @transform_4, window_bounds = array<i64: 128, 512>}, {pipeline_mode = #tpu.pipeline_mode<synchronous>, transform_indices = @transform_5, window_bounds = array<i64: 1, 512>}, {transform_indices = @transform_6, window_bounds = array<i64: 4, 8, 128>}, {transform_indices = @transform_7, window_bounds = array<i64: 1, 8, 128>}, {transform_indices = @transform_8, window_bounds = array<i64: 1, 8, 128>}]} {
    %c0_i32 = arith.constant 0 : i32
    %0 = arith.cmpi eq, %arg1, %c0_i32 : i32
    %1 = arith.extui %0 : i1 to i32
    %c0_i32_0 = arith.constant 0 : i32
    %2 = arith.cmpi ne, %1, %c0_i32_0 : i32
    scf.if %2 {
      %c0_65 = arith.constant 0 : index
      %c0_66 = arith.constant 0 : index
      %c0_67 = arith.constant 0 : index
      %162 = vector.load %arg3[%c0_65, %c0_66, %c0_67] : memref<1x8x128xf32, #tpu.memory_space<vmem>>, vector<1x8x128xf32>
      %163 = vector.shape_cast %162 : vector<1x8x128xf32> to vector<8x128xf32>
      %c0_68 = arith.constant 0 : index
      %c0_69 = arith.constant 0 : index
      %164 = vector.load %arg11[%c0_68, %c0_69] : memref<8x128xf32, #tpu.memory_space<vmem>>, vector<8x128xf32>
      tpu.vector_store %arg11[%c0_68, %c0_69], %163 {strides = array<i32>} : memref<8x128xf32, #tpu.memory_space<vmem>>, vector<8x128xf32>,
      %c0_70 = arith.constant 0 : index
      %c0_71 = arith.constant 0 : index
      %c0_72 = arith.constant 0 : index
      %165 = vector.load %arg4[%c0_70, %c0_71, %c0_72] : memref<1x8x128xf32, #tpu.memory_space<vmem>>, vector<1x8x128xf32>
      %166 = vector.shape_cast %165 : vector<1x8x128xf32> to vector<8x128xf32>
      %c0_73 = arith.constant 0 : index
      %c0_74 = arith.constant 0 : index
      %167 = vector.load %arg12[%c0_73, %c0_74] : memref<8x128xf32, #tpu.memory_space<vmem>>, vector<8x128xf32>
      tpu.vector_store %arg12[%c0_73, %c0_74], %166 {strides = array<i32>} : memref<8x128xf32, #tpu.memory_space<vmem>>, vector<8x128xf32>,
    } else {
    }
    %c0 = arith.constant 0 : index
    %c0_1 = arith.constant 0 : index
    %c0_2 = arith.constant 0 : index
    %3 = vector.load %arg2[%c0, %c0_1, %c0_2] : memref<4x8x128xf32, #tpu.memory_space<vmem>>, vector<4x8x128xf32>
    %4 = vector.shape_cast %3 : vector<4x8x128xf32> to vector<32x128xf32>
    %c0_3 = arith.constant 0 : index
    %c0_4 = arith.constant 0 : index
    %5 = vector.load %arg5[%c0_3, %c0_4] : memref<128x512xf32, #tpu.memory_space<vmem>>, vector<128x512xf32>
    %cst = arith.constant dense<0.000000e+00> : vector<32x512xf32>
    %6 = tpu.matmul %4, %5, %cst {dimension_numbers = #tpu.dot_dimension_numbers<[1], [0], [0], [1], [0, 0, 1, 1], [], []>} : vector<32x128xf32>, vector<128x512xf32>, vector<32x512xf32> -> vector<32x512xf32>
    %c0_5 = arith.constant 0 : index
    %c0_6 = arith.constant 0 : index
    %7 = vector.load %arg7[%c0_5, %c0_6] : memref<1x512xf32, #tpu.memory_space<vmem>>, vector<1x512xf32>
    %8 = vector.broadcast %7 : vector<1x512xf32> to vector<32x512xf32>
    %9 = arith.addf %6, %8 : vector<32x512xf32>
    %10 = vector.shape_cast %9 : vector<32x512xf32> to vector<4x8x512xf32>
    %c0_7 = arith.constant 0 : index
    %c0_8 = arith.constant 0 : index
    %c0_9 = arith.constant 0 : index
    %11 = vector.load %arg13[%c0_7, %c0_8, %c0_9] : memref<4x8x512xf32, #tpu.memory_space<vmem>>, vector<4x8x512xf32>
    tpu.vector_store %arg13[%c0_7, %c0_8, %c0_9], %10 {strides = array<i32>} : memref<4x8x512xf32, #tpu.memory_space<vmem>>, vector<4x8x512xf32>,
    %c0_10 = arith.constant 0 : index
    %c0_11 = arith.constant 0 : index
    %12 = vector.load %arg11[%c0_10, %c0_11] : memref<8x128xf32, #tpu.memory_space<vmem>>, vector<8x128xf32>
    %c0_12 = arith.constant 0 : index
    %c0_13 = arith.constant 0 : index
    %13 = vector.load %arg12[%c0_12, %c0_13] : memref<8x128xf32, #tpu.memory_space<vmem>>, vector<8x128xf32>
    %c0_i32_14 = arith.constant 0 : i32
    %14 = arith.index_cast %c0_i32_14 : i32 to index
    %c0_15 = arith.constant 0 : index
    %c0_16 = arith.constant 0 : index
    %15 = vector.load %arg13[%14, %c0_15, %c0_16] : memref<4x8x512xf32, #tpu.memory_space<vmem>>, vector<1x8x512xf32>
    %16 = vector.shape_cast %15 : vector<1x8x512xf32> to vector<8x512xf32>
    %c0_17 = arith.constant 0 : index
    %c0_18 = arith.constant 0 : index
    %17 = vector.load %arg6[%c0_17, %c0_18] : memref<128x512xf32, #tpu.memory_space<vmem>>, vector<128x512xf32>
    %cst_19 = arith.constant dense<0.000000e+00> : vector<8x512xf32>
    %18 = tpu.matmul %12, %17, %cst_19 {dimension_numbers = #tpu.dot_dimension_numbers<[1], [0], [0], [1], [0, 0, 1, 1], [], []>} : vector<8x128xf32>, vector<128x512xf32>, vector<8x512xf32> -> vector<8x512xf32>
    %19 = arith.addf %16, %18 : vector<8x512xf32>
    %20 = vector.extract_strided_slice %19 {offsets = [0, 0], sizes = [8, 128], strides = [1, 1]} : vector<8x512xf32> to vector<8x128xf32>
    %21 = arith.negf %20 : vector<8x128xf32>
    %22 = math.exp %21 : vector<8x128xf32>
    %cst_20 = arith.constant 1.000000e+00 : f32
    %23 = vector.broadcast %cst_20 : f32 to vector<8x128xf32>
    %24 = arith.addf %23, %22 : vector<8x128xf32>
    %25 = arith.divf %23, %24 : vector<8x128xf32>
    %26 = vector.extract_strided_slice %19 {offsets = [0, 128], sizes = [8, 128], strides = [1, 1]} : vector<8x512xf32> to vector<8x128xf32>
    %27 = arith.negf %26 : vector<8x128xf32>
    %28 = math.exp %27 : vector<8x128xf32>
    %cst_21 = arith.constant 1.000000e+00 : f32
    %29 = vector.broadcast %cst_21 : f32 to vector<8x128xf32>
    %30 = arith.addf %29, %28 : vector<8x128xf32>
    %31 = arith.divf %29, %30 : vector<8x128xf32>
    %32 = vector.extract_strided_slice %19 {offsets = [0, 256], sizes = [8, 128], strides = [1, 1]} : vector<8x512xf32> to vector<8x128xf32>
    %33 = math.tanh %32 : vector<8x128xf32>
    %34 = vector.extract_strided_slice %19 {offsets = [0, 384], sizes = [8, 128], strides = [1, 1]} : vector<8x512xf32> to vector<8x128xf32>
    %35 = arith.negf %34 : vector<8x128xf32>
    %36 = math.exp %35 : vector<8x128xf32>
    %cst_22 = arith.constant 1.000000e+00 : f32
    %37 = vector.broadcast %cst_22 : f32 to vector<8x128xf32>
    %38 = arith.addf %37, %36 : vector<8x128xf32>
    %39 = arith.divf %37, %38 : vector<8x128xf32>
    %40 = arith.mulf %31, %13 : vector<8x128xf32>
    %41 = arith.mulf %25, %33 : vector<8x128xf32>
    %42 = arith.addf %40, %41 : vector<8x128xf32>
    %43 = math.tanh %42 : vector<8x128xf32>
    %44 = arith.mulf %39, %43 : vector<8x128xf32>
    %45 = arith.index_cast %c0_i32_14 : i32 to index
    %c0_23 = arith.constant 0 : index
    %c0_24 = arith.constant 0 : index
    %46 = vector.load %arg8[%45, %c0_23, %c0_24] : memref<4x8x128xf32, #tpu.memory_space<vmem>>, vector<1x8x128xf32>
    %47 = vector.shape_cast %46 : vector<1x8x128xf32> to vector<8x128xf32>
    %48 = vector.shape_cast %44 : vector<8x128xf32> to vector<1x8x128xf32>
    tpu.vector_store %arg8[%45, %c0_23, %c0_24], %48 {strides = array<i32>} : memref<4x8x128xf32, #tpu.memory_space<vmem>>, vector<1x8x128xf32>,
    %c1_i32 = arith.constant 1 : i32
    %49 = arith.index_cast %c1_i32 : i32 to index
    %c0_25 = arith.constant 0 : index
    %c0_26 = arith.constant 0 : index
    %50 = vector.load %arg13[%49, %c0_25, %c0_26] : memref<4x8x512xf32, #tpu.memory_space<vmem>>, vector<1x8x512xf32>
    %51 = vector.shape_cast %50 : vector<1x8x512xf32> to vector<8x512xf32>
    %c0_27 = arith.constant 0 : index
    %c0_28 = arith.constant 0 : index
    %52 = vector.load %arg6[%c0_27, %c0_28] : memref<128x512xf32, #tpu.memory_space<vmem>>, vector<128x512xf32>
    %cst_29 = arith.constant dense<0.000000e+00> : vector<8x512xf32>
    %53 = tpu.matmul %44, %52, %cst_29 {dimension_numbers = #tpu.dot_dimension_numbers<[1], [0], [0], [1], [0, 0, 1, 1], [], []>} : vector<8x128xf32>, vector<128x512xf32>, vector<8x512xf32> -> vector<8x512xf32>
    %54 = arith.addf %51, %53 : vector<8x512xf32>
    %55 = vector.extract_strided_slice %54 {offsets = [0, 0], sizes = [8, 128], strides = [1, 1]} : vector<8x512xf32> to vector<8x128xf32>
    %56 = arith.negf %55 : vector<8x128xf32>
    %57 = math.exp %56 : vector<8x128xf32>
    %cst_30 = arith.constant 1.000000e+00 : f32
    %58 = vector.broadcast %cst_30 : f32 to vector<8x128xf32>
    %59 = arith.addf %58, %57 : vector<8x128xf32>
    %60 = arith.divf %58, %59 : vector<8x128xf32>
    %61 = vector.extract_strided_slice %54 {offsets = [0, 128], sizes = [8, 128], strides = [1, 1]} : vector<8x512xf32> to vector<8x128xf32>
    %62 = arith.negf %61 : vector<8x128xf32>
    %63 = math.exp %62 : vector<8x128xf32>
    %cst_31 = arith.constant 1.000000e+00 : f32
    %64 = vector.broadcast %cst_31 : f32 to vector<8x128xf32>
    %65 = arith.addf %64, %63 : vector<8x128xf32>
    %66 = arith.divf %64, %65 : vector<8x128xf32>
    %67 = vector.extract_strided_slice %54 {offsets = [0, 256], sizes = [8, 128], strides = [1, 1]} : vector<8x512xf32> to vector<8x128xf32>
    %68 = math.tanh %67 : vector<8x128xf32>
    %69 = vector.extract_strided_slice %54 {offsets = [0, 384], sizes = [8, 128], strides = [1, 1]} : vector<8x512xf32> to vector<8x128xf32>
    %70 = arith.negf %69 : vector<8x128xf32>
    %71 = math.exp %70 : vector<8x128xf32>
    %cst_32 = arith.constant 1.000000e+00 : f32
    %72 = vector.broadcast %cst_32 : f32 to vector<8x128xf32>
    %73 = arith.addf %72, %71 : vector<8x128xf32>
    %74 = arith.divf %72, %73 : vector<8x128xf32>
    %75 = arith.mulf %66, %42 : vector<8x128xf32>
    %76 = arith.mulf %60, %68 : vector<8x128xf32>
    %77 = arith.addf %75, %76 : vector<8x128xf32>
    %78 = math.tanh %77 : vector<8x128xf32>
    %79 = arith.mulf %74, %78 : vector<8x128xf32>
    %80 = arith.index_cast %c1_i32 : i32 to index
    %c0_33 = arith.constant 0 : index
    %c0_34 = arith.constant 0 : index
    %81 = vector.load %arg8[%80, %c0_33, %c0_34] : memref<4x8x128xf32, #tpu.memory_space<vmem>>, vector<1x8x128xf32>
    %82 = vector.shape_cast %81 : vector<1x8x128xf32> to vector<8x128xf32>
    %83 = vector.shape_cast %79 : vector<8x128xf32> to vector<1x8x128xf32>
    tpu.vector_store %arg8[%80, %c0_33, %c0_34], %83 {strides = array<i32>} : memref<4x8x128xf32, #tpu.memory_space<vmem>>, vector<1x8x128xf32>,
    %c2_i32 = arith.constant 2 : i32
    %84 = arith.index_cast %c2_i32 : i32 to index
    %c0_35 = arith.constant 0 : index
    %c0_36 = arith.constant 0 : index
    %85 = vector.load %arg13[%84, %c0_35, %c0_36] : memref<4x8x512xf32, #tpu.memory_space<vmem>>, vector<1x8x512xf32>
    %86 = vector.shape_cast %85 : vector<1x8x512xf32> to vector<8x512xf32>
    %c0_37 = arith.constant 0 : index
    %c0_38 = arith.constant 0 : index
    %87 = vector.load %arg6[%c0_37, %c0_38] : memref<128x512xf32, #tpu.memory_space<vmem>>, vector<128x512xf32>
    %cst_39 = arith.constant dense<0.000000e+00> : vector<8x512xf32>
    %88 = tpu.matmul %79, %87, %cst_39 {dimension_numbers = #tpu.dot_dimension_numbers<[1], [0], [0], [1], [0, 0, 1, 1], [], []>} : vector<8x128xf32>, vector<128x512xf32>, vector<8x512xf32> -> vector<8x512xf32>
    %89 = arith.addf %86, %88 : vector<8x512xf32>
    %90 = vector.extract_strided_slice %89 {offsets = [0, 0], sizes = [8, 128], strides = [1, 1]} : vector<8x512xf32> to vector<8x128xf32>
    %91 = arith.negf %90 : vector<8x128xf32>
    %92 = math.exp %91 : vector<8x128xf32>
    %cst_40 = arith.constant 1.000000e+00 : f32
    %93 = vector.broadcast %cst_40 : f32 to vector<8x128xf32>
    %94 = arith.addf %93, %92 : vector<8x128xf32>
    %95 = arith.divf %93, %94 : vector<8x128xf32>
    %96 = vector.extract_strided_slice %89 {offsets = [0, 128], sizes = [8, 128], strides = [1, 1]} : vector<8x512xf32> to vector<8x128xf32>
    %97 = arith.negf %96 : vector<8x128xf32>
    %98 = math.exp %97 : vector<8x128xf32>
    %cst_41 = arith.constant 1.000000e+00 : f32
    %99 = vector.broadcast %cst_41 : f32 to vector<8x128xf32>
    %100 = arith.addf %99, %98 : vector<8x128xf32>
    %101 = arith.divf %99, %100 : vector<8x128xf32>
    %102 = vector.extract_strided_slice %89 {offsets = [0, 256], sizes = [8, 128], strides = [1, 1]} : vector<8x512xf32> to vector<8x128xf32>
    %103 = math.tanh %102 : vector<8x128xf32>
    %104 = vector.extract_strided_slice %89 {offsets = [0, 384], sizes = [8, 128], strides = [1, 1]} : vector<8x512xf32> to vector<8x128xf32>
    %105 = arith.negf %104 : vector<8x128xf32>
    %106 = math.exp %105 : vector<8x128xf32>
    %cst_42 = arith.constant 1.000000e+00 : f32
    %107 = vector.broadcast %cst_42 : f32 to vector<8x128xf32>
    %108 = arith.addf %107, %106 : vector<8x128xf32>
    %109 = arith.divf %107, %108 : vector<8x128xf32>
    %110 = arith.mulf %101, %77 : vector<8x128xf32>
    %111 = arith.mulf %95, %103 : vector<8x128xf32>
    %112 = arith.addf %110, %111 : vector<8x128xf32>
    %113 = math.tanh %112 : vector<8x128xf32>
    %114 = arith.mulf %109, %113 : vector<8x128xf32>
    %115 = arith.index_cast %c2_i32 : i32 to index
    %c0_43 = arith.constant 0 : index
    %c0_44 = arith.constant 0 : index
    %116 = vector.load %arg8[%115, %c0_43, %c0_44] : memref<4x8x128xf32, #tpu.memory_space<vmem>>, vector<1x8x128xf32>
    %117 = vector.shape_cast %116 : vector<1x8x128xf32> to vector<8x128xf32>
    %118 = vector.shape_cast %114 : vector<8x128xf32> to vector<1x8x128xf32>
    tpu.vector_store %arg8[%115, %c0_43, %c0_44], %118 {strides = array<i32>} : memref<4x8x128xf32, #tpu.memory_space<vmem>>, vector<1x8x128xf32>,
    %c3_i32 = arith.constant 3 : i32
    %119 = arith.index_cast %c3_i32 : i32 to index
    %c0_45 = arith.constant 0 : index
    %c0_46 = arith.constant 0 : index
    %120 = vector.load %arg13[%119, %c0_45, %c0_46] : memref<4x8x512xf32, #tpu.memory_space<vmem>>, vector<1x8x512xf32>
    %121 = vector.shape_cast %120 : vector<1x8x512xf32> to vector<8x512xf32>
    %c0_47 = arith.constant 0 : index
    %c0_48 = arith.constant 0 : index
    %122 = vector.load %arg6[%c0_47, %c0_48] : memref<128x512xf32, #tpu.memory_space<vmem>>, vector<128x512xf32>
    %cst_49 = arith.constant dense<0.000000e+00> : vector<8x512xf32>
    %123 = tpu.matmul %114, %122, %cst_49 {dimension_numbers = #tpu.dot_dimension_numbers<[1], [0], [0], [1], [0, 0, 1, 1], [], []>} : vector<8x128xf32>, vector<128x512xf32>, vector<8x512xf32> -> vector<8x512xf32>
    %124 = arith.addf %121, %123 : vector<8x512xf32>
    %125 = vector.extract_strided_slice %124 {offsets = [0, 0], sizes = [8, 128], strides = [1, 1]} : vector<8x512xf32> to vector<8x128xf32>
    %126 = arith.negf %125 : vector<8x128xf32>
    %127 = math.exp %126 : vector<8x128xf32>
    %cst_50 = arith.constant 1.000000e+00 : f32
    %128 = vector.broadcast %cst_50 : f32 to vector<8x128xf32>
    %129 = arith.addf %128, %127 : vector<8x128xf32>
    %130 = arith.divf %128, %129 : vector<8x128xf32>
    %131 = vector.extract_strided_slice %124 {offsets = [0, 128], sizes = [8, 128], strides = [1, 1]} : vector<8x512xf32> to vector<8x128xf32>
    %132 = arith.negf %131 : vector<8x128xf32>
    %133 = math.exp %132 : vector<8x128xf32>
    %cst_51 = arith.constant 1.000000e+00 : f32
    %134 = vector.broadcast %cst_51 : f32 to vector<8x128xf32>
    %135 = arith.addf %134, %133 : vector<8x128xf32>
    %136 = arith.divf %134, %135 : vector<8x128xf32>
    %137 = vector.extract_strided_slice %124 {offsets = [0, 256], sizes = [8, 128], strides = [1, 1]} : vector<8x512xf32> to vector<8x128xf32>
    %138 = math.tanh %137 : vector<8x128xf32>
    %139 = vector.extract_strided_slice %124 {offsets = [0, 384], sizes = [8, 128], strides = [1, 1]} : vector<8x512xf32> to vector<8x128xf32>
    %140 = arith.negf %139 : vector<8x128xf32>
    %141 = math.exp %140 : vector<8x128xf32>
    %cst_52 = arith.constant 1.000000e+00 : f32
    %142 = vector.broadcast %cst_52 : f32 to vector<8x128xf32>
    %143 = arith.addf %142, %141 : vector<8x128xf32>
    %144 = arith.divf %142, %143 : vector<8x128xf32>
    %145 = arith.mulf %136, %112 : vector<8x128xf32>
    %146 = arith.mulf %130, %138 : vector<8x128xf32>
    %147 = arith.addf %145, %146 : vector<8x128xf32>
    %148 = math.tanh %147 : vector<8x128xf32>
    %149 = arith.mulf %144, %148 : vector<8x128xf32>
    %150 = arith.index_cast %c3_i32 : i32 to index
    %c0_53 = arith.constant 0 : index
    %c0_54 = arith.constant 0 : index
    %151 = vector.load %arg8[%150, %c0_53, %c0_54] : memref<4x8x128xf32, #tpu.memory_space<vmem>>, vector<1x8x128xf32>
    %152 = vector.shape_cast %151 : vector<1x8x128xf32> to vector<8x128xf32>
    %153 = vector.shape_cast %149 : vector<8x128xf32> to vector<1x8x128xf32>
    tpu.vector_store %arg8[%150, %c0_53, %c0_54], %153 {strides = array<i32>} : memref<4x8x128xf32, #tpu.memory_space<vmem>>, vector<1x8x128xf32>,
    %c4_i32 = arith.constant 4 : i32
    %c0_55 = arith.constant 0 : index
    %c0_56 = arith.constant 0 : index
    %154 = vector.load %arg11[%c0_55, %c0_56] : memref<8x128xf32, #tpu.memory_space<vmem>>, vector<8x128xf32>
    tpu.vector_store %arg11[%c0_55, %c0_56], %149 {strides = array<i32>} : memref<8x128xf32, #tpu.memory_space<vmem>>, vector<8x128xf32>,
    %c0_57 = arith.constant 0 : index
    %c0_58 = arith.constant 0 : index
    %155 = vector.load %arg12[%c0_57, %c0_58] : memref<8x128xf32, #tpu.memory_space<vmem>>, vector<8x128xf32>
    tpu.vector_store %arg12[%c0_57, %c0_58], %147 {strides = array<i32>} : memref<8x128xf32, #tpu.memory_space<vmem>>, vector<8x128xf32>,
    %c0_59 = arith.constant 0 : index
    %c0_60 = arith.constant 0 : index
    %c0_61 = arith.constant 0 : index
    %156 = vector.load %arg9[%c0_59, %c0_60, %c0_61] : memref<1x8x128xf32, #tpu.memory_space<vmem>>, vector<1x8x128xf32>
    %157 = vector.shape_cast %156 : vector<1x8x128xf32> to vector<8x128xf32>
    %158 = vector.shape_cast %149 : vector<8x128xf32> to vector<1x8x128xf32>
    tpu.vector_store %arg9[%c0_59, %c0_60, %c0_61], %158 {strides = array<i32>} : memref<1x8x128xf32, #tpu.memory_space<vmem>>, vector<1x8x128xf32>,
    %c0_62 = arith.constant 0 : index
    %c0_63 = arith.constant 0 : index
    %c0_64 = arith.constant 0 : index
    %159 = vector.load %arg10[%c0_62, %c0_63, %c0_64] : memref<1x8x128xf32, #tpu.memory_space<vmem>>, vector<1x8x128xf32>
    %160 = vector.shape_cast %159 : vector<1x8x128xf32> to vector<8x128xf32>
    %161 = vector.shape_cast %147 : vector<8x128xf32> to vector<1x8x128xf32>
    tpu.vector_store %arg10[%c0_62, %c0_63, %c0_64], %161 {strides = array<i32>} : memref<1x8x128xf32, #tpu.memory_space<vmem>>, vector<1x8x128xf32>,
    return
  }
  func.func @transform_0(%arg0: i32, %arg1: i32) -> (i32, i32, i32) {
    %c0_i32 = arith.constant 0 : i32
    %c0_i32_0 = arith.constant 0 : i32
    return %arg1, %arg0, %c0_i32 : i32, i32, i32
  }
  func.func @transform_1(%arg0: i32, %arg1: i32) -> (i32, i32, i32) {
    %c0_i32 = arith.constant 0 : i32
    %c0_i32_0 = arith.constant 0 : i32
    %c0_i32_1 = arith.constant 0 : i32
    return %c0_i32, %arg0, %c0_i32_0 : i32, i32, i32
  }
  func.func @transform_2(%arg0: i32, %arg1: i32) -> (i32, i32, i32) {
    %c0_i32 = arith.constant 0 : i32
    %c0_i32_0 = arith.constant 0 : i32
    %c0_i32_1 = arith.constant 0 : i32
    return %c0_i32, %arg0, %c0_i32_0 : i32, i32, i32
  }
  func.func @transform_3(%arg0: i32, %arg1: i32) -> (i32, i32) {
    %c0_i32 = arith.constant 0 : i32
    %c0_i32_0 = arith.constant 0 : i32
    %c0_i32_1 = arith.constant 0 : i32
    return %c0_i32, %c0_i32_0 : i32, i32
  }
  func.func @transform_4(%arg0: i32, %arg1: i32) -> (i32, i32) {
    %c0_i32 = arith.constant 0 : i32
    %c0_i32_0 = arith.constant 0 : i32
    %c0_i32_1 = arith.constant 0 : i32
    return %c0_i32, %c0_i32_0 : i32, i32
  }
  func.func @transform_5(%arg0: i32, %arg1: i32) -> (i32, i32) {
    %c0_i32 = arith.constant 0 : i32
    %c0_i32_0 = arith.constant 0 : i32
    %c0_i32_1 = arith.constant 0 : i32
    return %c0_i32, %c0_i32_0 : i32, i32
  }
  func.func @transform_6(%arg0: i32, %arg1: i32) -> (i32, i32, i32) {
    %c0_i32 = arith.constant 0 : i32
    %c0_i32_0 = arith.constant 0 : i32
    return %arg1, %arg0, %c0_i32 : i32, i32, i32
  }
  func.func @transform_7(%arg0: i32, %arg1: i32) -> (i32, i32, i32) {
    %c0_i32 = arith.constant 0 : i32
    %c0_i32_0 = arith.constant 0 : i32
    %c0_i32_1 = arith.constant 0 : i32
    return %c0_i32, %arg0, %c0_i32_0 : i32, i32, i32
  }
  func.func @transform_8(%arg0: i32, %arg1: i32) -> (i32, i32, i32) {
    %c0_i32 = arith.constant 0 : i32
    %c0_i32_0 = arith.constant 0 : i32
    %c0_i32_1 = arith.constant 0 : i32
    return %c0_i32, %arg0, %c0_i32_0 : i32, i32, i32
  }
}

</mosaic_0001>

<llo_original>
// kernel: tpu_custom_call.1
$region0: #{tpu_custom_call.1}
  #allocation0 [shape = 'u32[]', space=smem, size = 0x4, offset = 0x4, fixed_abs, tag = 'smem constant byte address 0x4 - core index']
  #allocation1 [shape = 'u32[144,128]{1,0:T(1,128)}', space=vmem, size = 0x12000, scoped, tag = 'internal scratch']
  #allocation2 [shape = 'f32[8,128]{1,0:T(8,128)}', space=vmem, size = 0x1000, scoped, tag = 'scratch operand']
  #allocation3 [shape = 'f32[8,128]{1,0:T(8,128)}', space=vmem, size = 0x1000, scoped, tag = 'scratch operand']
  #allocation4 [shape = 'f32[4,8,512]{2,1,0:T(8,128)}', space=vmem, size = 0x10000, scoped, tag = 'scratch operand']
  %s0 = inlined_call_operand.hbm [shape: f32[8,8,128], index: 0, kind: input, shape index: {}]
  %s1 = inlined_call_operand.hbm [shape: f32[1,8,128], index: 1, kind: input, shape index: {}]
  %s2 = inlined_call_operand.hbm [shape: f32[1,8,128], index: 2, kind: input, shape index: {}]
  %s3 = inlined_call_operand.hbm [shape: f32[128,512], index: 3, kind: input, shape index: {}]
  %s4 = inlined_call_operand.hbm [shape: f32[128,512], index: 4, kind: input, shape index: {}]
  %s5 = inlined_call_operand.vmem [shape: f32[1,512], index: 5, kind: input, shape index: {}]
  %s6 = inlined_call_operand.hbm [shape: f32[8,8,128], index: 6, kind: output, shape index: {0}]
  %s7 = inlined_call_operand.hbm [shape: f32[1,8,128], index: 7, kind: output, shape index: {1}]
  %s8 = inlined_call_operand.hbm [shape: f32[1,8,128], index: 8, kind: output, shape index: {2}]
  %9 = xla_tuple %s6, %s7, %s8
  %s10 = sld [smem:[#allocation0]]
  $region97: #{tpu_custom_call.1} parent=0
    _
  %s12 = ssub.s32 1, %s10
  %s13 = scalar_select 0, %s12, %s10
  $region1: #{tpu_custom_call.1} parent=0
    #allocation5 [shape = 'u8[32768]{0}', space=vmem, size = 0x8000, scoped, tag = 'input window, operand 0']
    #allocation6 [shape = 's32[2]{0}', space=sflag, size = 0x8, scoped, tag = 'scoped memory for tpu_custom_call.1']
    #allocation7 [shape = 's32[2]{0}', space=sflag, size = 0x8, scoped, tag = 'scoped memory for tpu_custom_call.1']
    #allocation8 [shape = 'u8[4096]{0}', space=vmem, size = 0x1000, scoped, tag = 'input window, operand 1, single buffered']
    #allocation9 [shape = 's32[1]{0}', space=sflag, size = 0x4, scoped, tag = 'scoped memory for tpu_custom_call.1']
    #allocation10 [shape = 'u8[4096]{0}', space=vmem, size = 0x1000, scoped, tag = 'input window, operand 2, single buffered']
    #allocation11 [shape = 'u8[262144]{0}', space=vmem, size = 0x40000, scoped, tag = 'input window, operand 3, single buffered']
    #allocation12 [shape = 's32[1]{0}', space=sflag, size = 0x4, scoped, tag = 'scoped memory for tpu_custom_call.1']
    #allocation13 [shape = 'u8[262144]{0}', space=vmem, size = 0x40000, scoped, tag = 'input window, operand 4, single buffered']
    #allocation14 [shape = 'u8[32768]{0}', space=vmem, size = 0x8000, scoped, tag = 'output window, operand 0']
    #allocation15 [shape = 'u8[4096]{0}', space=vmem, size = 0x1000, scoped, tag = 'output window, operand 1, single buffered']
    #allocation16 [shape = 's32[1]{0}', space=sflag, size = 0x4, scoped, tag = 'scoped memory for tpu_custom_call.1']
    #allocation17 [shape = 'u8[4096]{0}', space=vmem, size = 0x1000, scoped, tag = 'output window, operand 2, single buffered']
    %14 = vsyncpa [#allocation6], 0
    %s15 = scalar_lea.sflag [#allocation6], 1
    %16 = vsyncpa %s15, 0
    %17 = vsyncpa [#allocation9], 0
    %18 = vsyncpa [#allocation12], 0
    %19 = vsyncpa [#allocation7], 0
    %s20 = scalar_lea.sflag [#allocation7], 1
    %21 = vsyncpa %s20, 0
    %22 = vsyncpa [#allocation16], 0
    loop: start=0, step=1, limit=4
    $region2: #{tpu_custom_call.1} parent=1 // loop_pre_header
      _
    $region3: #{tpu_custom_call.1} parent=1 // loop_header
      %s24 = sphi 0, %s28
      %p25 = scmp.ge.s32.totalorder %s24, 4
      %s31 = sphi 0, %s43
      %s32 = sphi 0, %s39
      %s33 = sphi 0, %s31
      %s34 = sphi 0, %s32
      %s35 = sphi 0, %s33
      %s36 = sphi 0, %s34
      %s48 = sphi 0, %s50
      %s51 = sphi 0, %s48
      %s52 = sphi 0, %s51
      %s68 = sphi 0, %s52
      %s74 = sphi 0, %s76
      %s77 = sphi 0, %s74
      %s78 = sphi 0, %s77
      %s94 = sphi 0, %s78
      %s100 = sphi 0, %s102
      %s103 = sphi 0, %s100
      %s104 = sphi 0, %s103
      %s120 = sphi 0, %s104
      %s124 = sphi 0, %s124
      %s126 = sphi 0, %s124
      %s127 = sphi 0, %s126
      %s141 = sphi 0, %s127
      %s145 = sphi 0, %s145
      %s147 = sphi 0, %s145
      %s148 = sphi 0, %s147
      %s162 = sphi 0, %s148
      %s166 = sphi 0, %s166
      %s168 = sphi 0, %s166
      %s169 = sphi 0, %s168
      %s183 = sphi 0, %s169
      %s191 = sphi 0, %s193
      %s194 = sphi 0, %s191
      %s195 = sphi 0, %s194
      %s211 = sphi 0, %s195
      %s217 = sphi 0, %s219
      %s220 = sphi 0, %s217
      %s221 = sphi 0, %s220
      %s237 = sphi 0, %s221
      %s243 = sphi 0, %s245
      %s246 = sphi 0, %s243
      %s247 = sphi 0, %s246
      %s263 = sphi 0, %s247
    $region4: #{tpu_custom_call.1} parent=1 // loop_header_branch
      %27 = sbr.rel (%p25) target = $region8
    $region5: #{tpu_custom_call.1} parent=1 // loop_body
      %s29 = ssub.s32 %s24, 1
      %s30 = ssub.s32 %s24, 2
      %s37 = sadd.s32 1, %s32
      %p38 = scmp.ge.s32.totalorder %s37, 2
      %s39 = scalar_select %p38, 0, %s37
      %s40 = sadd.s32 1, %s31
      %s41 = scalar_select %p38, %s40, %s31
      %p42 = scmp.ge.s32.totalorder %s41, 1
      %s43 = scalar_select %p42, 0, %s41
      %s44 = ssub.s32 %s32, %s39
      %s45 = ssub.s32 %s31, %s43
      %s46 = sor.u32 %s44, %s45
      %p47 = scmp.eq.s32.totalorder %s46, 0
      %s49 = sadd.s32 %s48, 1
      %s50 = scalar_select %p47, %s48, %s49
      %p53 = pneg %p47
      %p54 = scmp.eq.s32.totalorder %s24, 1
      %p55 = por %p53, %p54
      %p56 = scmp.ne.s32.totalorder %s48, %s51
      %p57 = scmp.eq.s32.totalorder %s24, 0
      %p58 = por %p56, %p57
      %p59 = scmp.ne.s32.totalorder %s48, %s51
      %p60 = scmp.eq.s32.totalorder %s29, 1
      %p61 = por %p59, %p60
      %p62 = scmp.ne.s32.totalorder %s51, %s52
      %p63 = scmp.eq.s32.totalorder %s29, 0
      %p64 = por %p62, %p63
      %p65 = scmp.ne.s32.totalorder %s51, %s52
      %p66 = scmp.eq.s32.totalorder %s30, 1
      %p67 = por %p65, %p66
      %p69 = scmp.ne.s32.totalorder %s52, %s68
      %p70 = scmp.eq.s32.totalorder %s30, 0
      %p71 = por %p69, %p70
      %s72 = ssub.s32 %s31, %s43
      %p73 = scmp.eq.s32.totalorder %s72, 0
      %s75 = sadd.s32 %s74, 1
      %s76 = scalar_select %p73, %s74, %s75
      %p79 = pneg %p73
      %p80 = scmp.eq.s32.totalorder %s24, 1
      %p81 = por %p79, %p80
      %p82 = scmp.ne.s32.totalorder %s74, %s77
      %p83 = scmp.eq.s32.totalorder %s24, 0
      %p84 = por %p82, %p83
      %p85 = scmp.ne.s32.totalorder %s74, %s77
      %p86 = scmp.eq.s32.totalorder %s29, 1
      %p87 = por %p85, %p86
      %p88 = scmp.ne.s32.totalorder %s77, %s78
      %p89 = scmp.eq.s32.totalorder %s29, 0
      %p90 = por %p88, %p89
      %p91 = scmp.ne.s32.totalorder %s77, %s78
      %p92 = scmp.eq.s32.totalorder %s30, 1
      %p93 = por %p91, %p92
      %p95 = scmp.ne.s32.totalorder %s78, %s94
      %p96 = scmp.eq.s32.totalorder %s30, 0
      %p97 = por %p95, %p96
      %s98 = ssub.s32 %s31, %s43
      %p99 = scmp.eq.s32.totalorder %s98, 0
      %s101 = sadd.s32 %s100, 1
      %s102 = scalar_select %p99, %s100, %s101
      %p105 = pneg %p99
      %p106 = scmp.eq.s32.totalorder %s24, 1
      %p107 = por %p105, %p106
      %p108 = scmp.ne.s32.totalorder %s100, %s103
      %p109 = scmp.eq.s32.totalorder %s24, 0
      %p110 = por %p108, %p109
      %p111 = scmp.ne.s32.totalorder %s100, %s103
      %p112 = scmp.eq.s32.totalorder %s29, 1
      %p113 = por %p111, %p112
      %p114 = scmp.ne.s32.totalorder %s103, %s104
      %p115 = scmp.eq.s32.totalorder %s29, 0
      %p116 = por %p114, %p115
      %p117 = scmp.ne.s32.totalorder %s103, %s104
      %p118 = scmp.eq.s32.totalorder %s30, 1
      %p119 = por %p117, %p118
      %p121 = scmp.ne.s32.totalorder %s104, %s120
      %p122 = scmp.eq.s32.totalorder %s30, 0
      %p123 = por %p121, %p122
      %s125 = sadd.s32 %s124, 1
      %p128 = scmp.eq.s32.totalorder %s24, 1
      %p129 = scmp.ne.s32.totalorder %s124, %s126
      %p130 = scmp.eq.s32.totalorder %s24, 0
      %p131 = por %p129, %p130
      %p132 = scmp.ne.s32.totalorder %s124, %s126
      %p133 = scmp.eq.s32.totalorder %s29, 1
      %p134 = por %p132, %p133
      %p135 = scmp.ne.s32.totalorder %s126, %s127
      %p136 = scmp.eq.s32.totalorder %s29, 0
      %p137 = por %p135, %p136
      %p138 = scmp.ne.s32.totalorder %s126, %s127
      %p139 = scmp.eq.s32.totalorder %s30, 1
      %p140 = por %p138, %p139
      %p142 = scmp.ne.s32.totalorder %s127, %s141
      %p143 = scmp.eq.s32.totalorder %s30, 0
      %p144 = por %p142, %p143
      %s146 = sadd.s32 %s145, 1
      %p149 = scmp.eq.s32.totalorder %s24, 1
      %p150 = scmp.ne.s32.totalorder %s145, %s147
      %p151 = scmp.eq.s32.totalorder %s24, 0
      %p152 = por %p150, %p151
      %p153 = scmp.ne.s32.totalorder %s145, %s147
      %p154 = scmp.eq.s32.totalorder %s29, 1
      %p155 = por %p153, %p154
      %p156 = scmp.ne.s32.totalorder %s147, %s148
      %p157 = scmp.eq.s32.totalorder %s29, 0
      %p158 = por %p156, %p157
      %p159 = scmp.ne.s32.totalorder %s147, %s148
      %p160 = scmp.eq.s32.totalorder %s30, 1
      %p161 = por %p159, %p160
      %p163 = scmp.ne.s32.totalorder %s148, %s162
      %p164 = scmp.eq.s32.totalorder %s30, 0
      %p165 = por %p163, %p164
      %s167 = sadd.s32 %s166, 1
      %p170 = scmp.eq.s32.totalorder %s24, 1
      %p171 = scmp.ne.s32.totalorder %s166, %s168
      %p172 = scmp.eq.s32.totalorder %s24, 0
      %p173 = por %p171, %p172
      %p174 = scmp.ne.s32.totalorder %s166, %s168
      %p175 = scmp.eq.s32.totalorder %s29, 1
      %p176 = por %p174, %p175
      %p177 = scmp.ne.s32.totalorder %s168, %s169
      %p178 = scmp.eq.s32.totalorder %s29, 0
      %p179 = por %p177, %p178
      %p180 = scmp.ne.s32.totalorder %s168, %s169
      %p181 = scmp.eq.s32.totalorder %s30, 1
      %p182 = por %p180, %p181
      %p184 = scmp.ne.s32.totalorder %s169, %s183
      %p185 = scmp.eq.s32.totalorder %s30, 0
      %p186 = por %p184, %p185
      %s187 = ssub.s32 %s32, %s39
      %s188 = ssub.s32 %s31, %s43
      %s189 = sor.u32 %s187, %s188
      %p190 = scmp.eq.s32.totalorder %s189, 0
      %s192 = sadd.s32 %s191, 1
      %s193 = scalar_select %p190, %s191, %s192
      %p196 = pneg %p190
      %p197 = scmp.eq.s32.totalorder %s24, 1
      %p198 = por %p196, %p197
      %p199 = scmp.ne.s32.totalorder %s191, %s194
      %p200 = scmp.eq.s32.totalorder %s24, 0
      %p201 = por %p199, %p200
      %p202 = scmp.ne.s32.totalorder %s191, %s194
      %p203 = scmp.eq.s32.totalorder %s29, 1
      %p204 = por %p202, %p203
      %p205 = scmp.ne.s32.totalorder %s194, %s195
      %p206 = scmp.eq.s32.totalorder %s29, 0
      %p207 = por %p205, %p206
      %p208 = scmp.ne.s32.totalorder %s194, %s195
      %p209 = scmp.eq.s32.totalorder %s30, 1
      %p210 = por %p208, %p209
      %p212 = scmp.ne.s32.totalorder %s195, %s211
      %p213 = scmp.eq.s32.totalorder %s30, 0
      %p214 = por %p212, %p213
      %s215 = ssub.s32 %s31, %s43
      %p216 = scmp.eq.s32.totalorder %s215, 0
      %s218 = sadd.s32 %s217, 1
      %s219 = scalar_select %p216, %s217, %s218
      %p222 = pneg %p216
      %p223 = scmp.eq.s32.totalorder %s24, 1
      %p224 = por %p222, %p223
      %p225 = scmp.ne.s32.totalorder %s217, %s220
      %p226 = scmp.eq.s32.totalorder %s24, 0
      %p227 = por %p225, %p226
      %p228 = scmp.ne.s32.totalorder %s217, %s220
      %p229 = scmp.eq.s32.totalorder %s29, 1
      %p230 = por %p228, %p229
      %p231 = scmp.ne.s32.totalorder %s220, %s221
      %p232 = scmp.eq.s32.totalorder %s29, 0
      %p233 = por %p231, %p232
      %p234 = scmp.ne.s32.totalorder %s220, %s221
      %p235 = scmp.eq.s32.totalorder %s30, 1
      %p236 = por %p234, %p235
      %p238 = scmp.ne.s32.totalorder %s221, %s237
      %p239 = scmp.eq.s32.totalorder %s30, 0
      %p240 = por %p238, %p239
      %s241 = ssub.s32 %s31, %s43
      %p242 = scmp.eq.s32.totalorder %s241, 0
      %s244 = sadd.s32 %s243, 1
      %s245 = scalar_select %p242, %s243, %s244
      %p248 = pneg %p242
      %p249 = scmp.eq.s32.totalorder %s24, 1
      %p250 = por %p248, %p249
      %p251 = scmp.ne.s32.totalorder %s243, %s246
      %p252 = scmp.eq.s32.totalorder %s24, 0
      %p253 = por %p251, %p252
      %p254 = scmp.ne.s32.totalorder %s243, %s246
      %p255 = scmp.eq.s32.totalorder %s29, 1
      %p256 = por %p254, %p255
      %p257 = scmp.ne.s32.totalorder %s246, %s247
      %p258 = scmp.eq.s32.totalorder %s29, 0
      %p259 = por %p257, %p258
      %p260 = scmp.ne.s32.totalorder %s246, %s247
      %p261 = scmp.eq.s32.totalorder %s30, 1
      %p262 = por %p260, %p261
      %p264 = scmp.ne.s32.totalorder %s247, %s263
      %p265 = scmp.eq.s32.totalorder %s30, 0
      %p266 = por %p264, %p265
      %p267 = scmp.le.s32.totalorder 1, %s24
      %p268 = scmp.lt.s32.totalorder %s24, 3
      %p269 = pnand %p267, %p268
      %p270 = pneg %p269
      // Predicated region
      $region9: #{tpu_custom_call.1} parent=5 // pred_check
        _
      $region10: #{tpu_custom_call.1} parent=5 // pred_check_branch
        %272 = sbr.rel (%p269) target = $region12
      $region11: #{tpu_custom_call.1} parent=5 // pred_region
        %s273 = ssub.s32 %s24, 1
        // Predicated region
        $region13: #{tpu_custom_call.1} parent=11 // pred_check
          %p274 = pneg %p90
        $region14: #{tpu_custom_call.1} parent=11 // pred_check_branch
          %276 = sbr.rel (%p274) target = $region16
        $region15: #{tpu_custom_call.1} parent=11 // pred_region
          %s278 = ssub.s32 128, 128
          %279 = vsyncadd [#allocation9], %s278
          %s280 = smul.addr %s33, 128
          %s281 = scalar_lea.hbm %s1, %s280
          %s283 = sshll.u32 [#allocation8], 4
          %s284 = int_to_ptr.vmem [resolvable:$true] %s283
          %286 = dma.hbm_to_vmem [thread:$0]  %s281, 128, %s284, [#allocation9]
        $region16: #{tpu_custom_call.1} parent=11 // pred_fallthru
          _
        // Predicated region
        $region17: #{tpu_custom_call.1} parent=11 // pred_check
          %p287 = pneg %p116
        $region18: #{tpu_custom_call.1} parent=11 // pred_check_branch
          %289 = sbr.rel (%p287) target = $region20
        $region19: #{tpu_custom_call.1} parent=11 // pred_region
          %s291 = ssub.s32 128, 128
          %292 = vsyncadd [#allocation9], %s291
          %s293 = smul.addr %s33, 128
          %s294 = scalar_lea.hbm %s2, %s293
          %s296 = sshll.u32 [#allocation10], 4
          %s297 = int_to_ptr.vmem [resolvable:$true] %s296
          %299 = dma.hbm_to_vmem [thread:$0]  %s294, 128, %s297, [#allocation9]
        $region20: #{tpu_custom_call.1} parent=11 // pred_fallthru
          _
        // Predicated region
        $region21: #{tpu_custom_call.1} parent=11 // pred_check
          %p300 = pneg %p137
        $region22: #{tpu_custom_call.1} parent=11 // pred_check_branch
          %302 = sbr.rel (%p300) target = $region24
        $region23: #{tpu_custom_call.1} parent=11 // pred_region
          %s304 = ssub.s32 8192, 8192
          %305 = vsyncadd [#allocation12], %s304
          %s306 = sshll.u32 [#allocation11], 4
          %s307 = int_to_ptr.vmem [resolvable:$true] %s306
          %312 = dma.hbm_to_vmem [thread:$0]  %s3, 8192, %s307, [#allocation12], 512, 512, 32
        $region24: #{tpu_custom_call.1} parent=11 // pred_fallthru
          _
        // Predicated region
        $region25: #{tpu_custom_call.1} parent=11 // pred_check
          %p313 = pneg %p158
        $region26: #{tpu_custom_call.1} parent=11 // pred_check_branch
          %315 = sbr.rel (%p313) target = $region28
        $region27: #{tpu_custom_call.1} parent=11 // pred_region
          %s317 = ssub.s32 8192, 8192
          %318 = vsyncadd [#allocation12], %s317
          %s319 = sshll.u32 [#allocation13], 4
          %s320 = int_to_ptr.vmem [resolvable:$true] %s319
          %325 = dma.hbm_to_vmem [thread:$0]  %s4, 8192, %s320, [#allocation12], 512, 512, 32
        $region28: #{tpu_custom_call.1} parent=11 // pred_fallthru
          _
        // Predicated region
        $region29: #{tpu_custom_call.1} parent=11 // pred_check
          %p326 = pneg %p179
        $region30: #{tpu_custom_call.1} parent=11 // pred_check_branch
          %328 = sbr.rel (%p326) target = $region32
        $region31: #{tpu_custom_call.1} parent=11 // pred_region
          _
        $region32: #{tpu_custom_call.1} parent=11 // pred_fallthru
          _
      $region12: #{tpu_custom_call.1} parent=5 // pred_fallthru
        _
      %p329 = scmp.lt.s32.totalorder %s24, 2
      // Predicated region
      $region33: #{tpu_custom_call.1} parent=5 // pred_check
        %p330 = pneg %p329
      $region34: #{tpu_custom_call.1} parent=5 // pred_check_branch
        %332 = sbr.rel (%p330) target = $region36
      $region35: #{tpu_custom_call.1} parent=5 // pred_region
        // Predicated region
        $region37: #{tpu_custom_call.1} parent=35 // pred_check
          %p333 = pneg %p58
        $region38: #{tpu_custom_call.1} parent=35 // pred_check_branch
          %335 = sbr.rel (%p333) target = $region40
        $region39: #{tpu_custom_call.1} parent=35 // pred_region
          %s336 = sand.u32 %s48, 1
          %s337 = scalar_lea.sflag [#allocation6], %s336
          %s338 = sand.u32 %s48, 1
          %s339 = smul.addr %s338, 32
          %s340 = scalar_lea.vmem [#allocation5], %s339
          %s341 = smul.u32 4, %s32
          %s343 = ssub.s32 512, 512
          %344 = vsyncadd %s337, %s343
          %s345 = sadd.s32 %s31, %s341
          %s346 = smul.addr %s345, 128
          %s347 = scalar_lea.hbm %s0, %s346
          %s348 = sshll.u32 %s340, 4
          %s349 = int_to_ptr.vmem [resolvable:$true] %s348
          %354 = dma.hbm_to_vmem [thread:$0]  %s347, 512, %s349, %s337, 128, 128, 8
        $region40: #{tpu_custom_call.1} parent=35 // pred_fallthru
          _
      $region36: #{tpu_custom_call.1} parent=5 // pred_fallthru
        _
      %p355 = scmp.le.s32.totalorder 1, %s24
      %p356 = scmp.lt.s32.totalorder %s24, 3
      %p357 = pnand %p355, %p356
      %p358 = pneg %p357
      // Predicated region
      $region41: #{tpu_custom_call.1} parent=5 // pred_check
        _
      $region42: #{tpu_custom_call.1} parent=5 // pred_check_branch
        %360 = sbr.rel (%p357) target = $region44
      $region43: #{tpu_custom_call.1} parent=5 // pred_region
        %s361 = ssub.s32 %s24, 1
        %s362 = sand.u32 %s51, 1
        %s363 = scalar_lea.sflag [#allocation6], %s362
        %s364 = sand.u32 %s51, 1
        %s365 = smul.addr %s364, 32
        %s366 = scalar_lea.vmem [#allocation5], %s365
        // Predicated region
        $region45: #{tpu_custom_call.1} parent=43 // pred_check
          %p367 = pneg %p64
        $region46: #{tpu_custom_call.1} parent=43 // pred_check_branch
          %369 = sbr.rel (%p367) target = $region48
        $region47: #{tpu_custom_call.1} parent=43 // pred_region
          %370 = dma.done %s363, 512
        $region48: #{tpu_custom_call.1} parent=43 // pred_fallthru
          _
        // Predicated region
        $region49: #{tpu_custom_call.1} parent=43 // pred_check
          %p371 = pneg %p90
        $region50: #{tpu_custom_call.1} parent=43 // pred_check_branch
          %373 = sbr.rel (%p371) target = $region52
        $region51: #{tpu_custom_call.1} parent=43 // pred_region
          %374 = dma.done [#allocation9], 128
        $region52: #{tpu_custom_call.1} parent=43 // pred_fallthru
          _
        // Predicated region
        $region53: #{tpu_custom_call.1} parent=43 // pred_check
          %p375 = pneg %p116
        $region54: #{tpu_custom_call.1} parent=43 // pred_check_branch
          %377 = sbr.rel (%p375) target = $region56
        $region55: #{tpu_custom_call.1} parent=43 // pred_region
          %378 = dma.done [#allocation9], 128
        $region56: #{tpu_custom_call.1} parent=43 // pred_fallthru
          _
        // Predicated region
        $region57: #{tpu_custom_call.1} parent=43 // pred_check
          %p379 = pneg %p137
        $region58: #{tpu_custom_call.1} parent=43 // pred_check_branch
          %381 = sbr.rel (%p379) target = $region60
        $region59: #{tpu_custom_call.1} parent=43 // pred_region
          %382 = dma.done [#allocation12], 8192
        $region60: #{tpu_custom_call.1} parent=43 // pred_fallthru
          _
        // Predicated region
        $region61: #{tpu_custom_call.1} parent=43 // pred_check
          %p383 = pneg %p158
        $region62: #{tpu_custom_call.1} parent=43 // pred_check_branch
          %385 = sbr.rel (%p383) target = $region64
        $region63: #{tpu_custom_call.1} parent=43 // pred_region
          %386 = dma.done [#allocation12], 8192
        $region64: #{tpu_custom_call.1} parent=43 // pred_fallthru
          _
        %s387 = sand.u32 %s51, 1
        %s388 = scalar_lea.sflag [#allocation6], %s387
        %s389 = sand.u32 %s51, 1
        %s390 = smul.addr %s389, 32
        %s391 = scalar_lea.vmem [#allocation5], %s390
        %p392 = pneg %p64
        %p393 = pneg %p61
        %p394 = pneg %p90
        %p395 = pneg %p87
        %p396 = pneg %p116
        %p397 = pneg %p113
        %p398 = pneg %p137
        %p399 = pneg %p134
        %p400 = pneg %p158
        %p401 = pneg %p155
        %p402 = pneg %p179
        %p403 = pneg %p176
        %p404 = pneg %p207
        %p405 = pneg %p204
        %s406 = sand.u32 %s194, 1
        %s407 = scalar_lea.sflag [#allocation7], %s406
        %s408 = sand.u32 %s194, 1
        %s409 = smul.addr %s408, 32
        %s410 = scalar_lea.vmem [#allocation14], %s409
        %p411 = pneg %p233
        %p412 = pneg %p230
        %p413 = pneg %p259
        %p414 = pneg %p256
        %s415 = smul.u32 4, %s34
        %s416 = smul.u32 4, %s34
        %p417 = scmp.eq.s32.totalorder %s34, 0
        // Predicated region
        $region65: #{tpu_custom_call.1} parent=43 // pred_check
          %p418 = pneg %p417
        $region66: #{tpu_custom_call.1} parent=43 // pred_check_branch
          %420 = sbr.rel (%p418) target = $region68
        $region67: #{tpu_custom_call.1} parent=43 // pred_region
          %v421 = vld [vmem:[#allocation8] sm:$0xff]
          %422 = vst [vmem:[#allocation2] sm:$0xff] %v421
          %v423 = vld [vmem:[#allocation10] sm:$0xff]
          %424 = vst [vmem:[#allocation3] sm:$0xff] %v423
        $region68: #{tpu_custom_call.1} parent=43 // pred_fallthru
          _
        %v425 = vld [vmem:[%s366] sm:$0xff]
        %v426 = vld [vmem:[%s366 + $0x8] sm:$0xff]
        %v427 = vld [vmem:[%s366 + $0x10] sm:$0xff]
        %v428 = vld [vmem:[%s366 + $0x18] sm:$0xff]
        %v429 = vld [vmem:[#allocation11] sm:$0xff]
        %v430 = vld [vmem:[#allocation11 + $0x8] sm:$0xff]
        %v431 = vld [vmem:[#allocation11 + $0x10] sm:$0xff]
        %v432 = vld [vmem:[#allocation11 + $0x18] sm:$0xff]
        %v433 = vld [vmem:[#allocation11 + $0x20] sm:$0xff]
        %v434 = vld [vmem:[#allocation11 + $0x28] sm:$0xff]
        %v435 = vld [vmem:[#allocation11 + $0x30] sm:$0xff]
        %v436 = vld [vmem:[#allocation11 + $0x38] sm:$0xff]
        %v437 = vld [vmem:[#allocation11 + $0x40] sm:$0xff]
        %v438 = vld [vmem:[#allocation11 + $0x48] sm:$0xff]
        %v439 = vld [vmem:[#allocation11 + $0x50] sm:$0xff]
        %v440 = vld [vmem:[#allocation11 + $0x58] sm:$0xff]
        %v441 = vld [vmem:[#allocation11 + $0x60] sm:$0xff]
        %v442 = vld [vmem:[#allocation11 + $0x68] sm:$0xff]
        %v443 = vld [vmem:[#allocation11 + $0x70] sm:$0xff]
        %v444 = vld [vmem:[#allocation11 + $0x78] sm:$0xff]
        %v445 = vld [vmem:[#allocation11 + $0x80] sm:$0xff]
        %v446 = vld [vmem:[#allocation11 + $0x88] sm:$0xff]
        %v447 = vld [vmem:[#allocation11 + $0x90] sm:$0xff]
        %v448 = vld [vmem:[#allocation11 + $0x98] sm:$0xff]
        %v449 = vld [vmem:[#allocation11 + $0xa0] sm:$0xff]
        %v450 = vld [vmem:[#allocation11 + $0xa8] sm:$0xff]
        %v451 = vld [vmem:[#allocation11 + $0xb0] sm:$0xff]
        %v452 = vld [vmem:[#allocation11 + $0xb8] sm:$0xff]
        %v453 = vld [vmem:[#allocation11 + $0xc0] sm:$0xff]
        %v454 = vld [vmem:[#allocation11 + $0xc8] sm:$0xff]
        %v455 = vld [vmem:[#allocation11 + $0xd0] sm:$0xff]
        %v456 = vld [vmem:[#allocation11 + $0xd8] sm:$0xff]
        %v457 = vld [vmem:[#allocation11 + $0xe0] sm:$0xff]
        %v458 = vld [vmem:[#allocation11 + $0xe8] sm:$0xff]
        %v459 = vld [vmem:[#allocation11 + $0xf0] sm:$0xff]
        %v460 = vld [vmem:[#allocation11 + $0xf8] sm:$0xff]
        %v461 = vld [vmem:[#allocation11 + $0x100] sm:$0xff]
        %v462 = vld [vmem:[#allocation11 + $0x108] sm:$0xff]
        %v463 = vld [vmem:[#allocation11 + $0x110] sm:$0xff]
        %v464 = vld [vmem:[#allocation11 + $0x118] sm:$0xff]
        %v465 = vld [vmem:[#allocation11 + $0x120] sm:$0xff]
        %v466 = vld [vmem:[#allocation11 + $0x128] sm:$0xff]
        %v467 = vld [vmem:[#allocation11 + $0x130] sm:$0xff]
        %v468 = vld [vmem:[#allocation11 + $0x138] sm:$0xff]
        %v469 = vld [vmem:[#allocation11 + $0x140] sm:$0xff]
        %v470 = vld [vmem:[#allocation11 + $0x148] sm:$0xff]
        %v471 = vld [vmem:[#allocation11 + $0x150] sm:$0xff]
        %v472 = vld [vmem:[#allocation11 + $0x158] sm:$0xff]
        %v473 = vld [vmem:[#allocation11 + $0x160] sm:$0xff]
        %v474 = vld [vmem:[#allocation11 + $0x168] sm:$0xff]
        %v475 = vld [vmem:[#allocation11 + $0x170] sm:$0xff]
        %v476 = vld [vmem:[#allocation11 + $0x178] sm:$0xff]
        %v477 = vld [vmem:[#allocation11 + $0x180] sm:$0xff]
        %v478 = vld [vmem:[#allocation11 + $0x188] sm:$0xff]
        %v479 = vld [vmem:[#allocation11 + $0x190] sm:$0xff]
        %v480 = vld [vmem:[#allocation11 + $0x198] sm:$0xff]
        %v481 = vld [vmem:[#allocation11 + $0x1a0] sm:$0xff]
        %v482 = vld [vmem:[#allocation11 + $0x1a8] sm:$0xff]
        %v483 = vld [vmem:[#allocation11 + $0x1b0] sm:$0xff]
        %v484 = vld [vmem:[#allocation11 + $0x1b8] sm:$0xff]
        %v485 = vld [vmem:[#allocation11 + $0x1c0] sm:$0xff]
        %v486 = vld [vmem:[#allocation11 + $0x1c8] sm:$0xff]
        %v487 = vld [vmem:[#allocation11 + $0x1d0] sm:$0xff]
        %v488 = vld [vmem:[#allocation11 + $0x1d8] sm:$0xff]
        %v489 = vld [vmem:[#allocation11 + $0x1e0] sm:$0xff]
        %v490 = vld [vmem:[#allocation11 + $0x1e8] sm:$0xff]
        %v491 = vld [vmem:[#allocation11 + $0x1f0] sm:$0xff]
        %v492 = vld [vmem:[#allocation11 + $0x1f8] sm:$0xff]
        %v493 = vld [vmem:[%s5] sm:$0xf]
        %v495 = vlaneseq
        %v496 = vshrl.u32 %v495, 7
        %v497 = vsub.s32 0, %v496
        %v498 = vrot.slane %v493, %v497
        %v499 = vlaneseq
        %v500 = vshrl.u32 %v499, 7
        %v501 = vsub.s32 1, %v500
        %v502 = vrot.slane %v493, %v501
        %v503 = vlaneseq
        %v504 = vshrl.u32 %v503, 7
        %v505 = vsub.s32 2, %v504
        %v506 = vrot.slane %v493, %v505
        %v507 = vlaneseq
        %v508 = vshrl.u32 %v507, 7
        %v509 = vsub.s32 3, %v508
        %v510 = vrot.slane %v493, %v509
        %515 = vmatprep.subr.mxu0 %v490
        %516 = vmatpush1.msra.mxu0 %v489
        %517 = vmatprep.subr.mxu0 %v486
        %518 = vmatpush1.msra.mxu0 %v485
        %519 = vmatprep.subr.mxu0 %v482
        %520 = vmatpush1.msra.mxu0 %v481
        %521 = vmatprep.subr.mxu0 %v478
        %522 = vmatpush1.msra.mxu0 %v477
        %523 = vmatprep.subr.mxu0 %v474
        %524 = vmatpush1.msra.mxu0 %v473
        %525 = vmatprep.subr.mxu0 %v470
        %526 = vmatpush1.msra.mxu0 %v469
        %527 = vmatprep.subr.mxu0 %v466
        %528 = vmatpush1.msra.mxu0 %v465
        %529 = vmatprep.subr.mxu0 %v462
        %530 = vmatpush1.msra.mxu0 %v461
        %531 = vmatprep.subr.mxu0 %v458
        %532 = vmatpush1.msra.mxu0 %v457
        %533 = vmatprep.subr.mxu0 %v454
        %534 = vmatpush1.msra.mxu0 %v453
        %535 = vmatprep.subr.mxu0 %v450
        %536 = vmatpush1.msra.mxu0 %v449
        %537 = vmatprep.subr.mxu0 %v446
        %538 = vmatpush1.msra.mxu0 %v445
        %539 = vmatprep.subr.mxu0 %v442
        %540 = vmatpush1.msra.mxu0 %v441
        %541 = vmatprep.subr.mxu0 %v438
        %542 = vmatpush1.msra.mxu0 %v437
        %543 = vmatprep.subr.mxu0 %v434
        %544 = vmatpush1.msra.mxu0 %v433
        %545 = vmatprep.subr.mxu0 %v430
        %546 = vmatpush1.msra.mxu0 %v429
        %547 = vmatprep.subr.mxu0 0.0
        %548 = vmatpush2.msra.mxu0 0.0
        %549 = vmatprep.subr.mxu0 0.0
        %550 = vmatpush2.msra.mxu0 0.0
        %551 = vmatprep.subr.mxu0 0.0
        %552 = vmatpush2.msra.mxu0 0.0
        %553 = vmatprep.subr.mxu0 0.0
        %554 = vmatpush2.msra.mxu0 0.0
        %555 = vmatprep.subr.mxu0 0.0
        %556 = vmatpush2.msra.mxu0 0.0
        %557 = vmatprep.subr.mxu0 0.0
        %558 = vmatpush2.msra.mxu0 0.0
        %559 = vmatprep.subr.mxu0 0.0
        %560 = vmatpush2.msra.mxu0 0.0
        %561 = vmatprep.subr.mxu0 0.0
        %562 = vmatpush2.msra.mxu0 0.0
        %563 = vmatprep.subr.mxu0 0.0
        %564 = vmatpush2.msra.mxu0 0.0
        %565 = vmatprep.subr.mxu0 0.0
        %566 = vmatpush2.msra.mxu0 0.0
        %567 = vmatprep.subr.mxu0 0.0
        %568 = vmatpush2.msra.mxu0 0.0
        %569 = vmatprep.subr.mxu0 0.0
        %570 = vmatpush2.msra.mxu0 0.0
        %571 = vmatprep.subr.mxu0 0.0
        %572 = vmatpush2.msra.mxu0 0.0
        %573 = vmatprep.subr.mxu0 0.0
        %574 = vmatpush2.msra.mxu0 0.0
        %575 = vmatprep.subr.mxu0 0.0
        %576 = vmatpush2.msra.mxu0 0.0
        %577 = vmatprep.subr.mxu0 0.0
        %578 = vmatpush2.msra.mxu0 0.0
        %579 = vmatprep.mubr.f32.mxu0 0.0
        %580 = vmatmul.mubr.f32.gmra.mxu0 %v425
        %v581 = vpop.f32.mrf.mxu0
        %v582 = vadd.f32 %v498, %v581
        %v583 = vpop.f32.mrf.mxu0
        %v584 = vadd.f32 %v502, %v583
        %585 = vmatprep.mubr.f32.mxu0 0.0
        %586 = vmatmul.mubr.f32.gmra.mxu0 %v426
        %v587 = vpop.f32.mrf.mxu0
        %v588 = vadd.f32 %v498, %v587
        %v589 = vpop.f32.mrf.mxu0
        %v590 = vadd.f32 %v502, %v589
        %591 = vmatprep.mubr.f32.mxu0 0.0
        %592 = vmatmul.mubr.f32.gmra.mxu0 %v427
        %v593 = vpop.f32.mrf.mxu0
        %v594 = vadd.f32 %v498, %v593
        %v595 = vpop.f32.mrf.mxu0
        %v596 = vadd.f32 %v502, %v595
        %597 = vmatprep.mubr.f32.mxu0 0.0
        %598 = vmatmul.mubr.f32.gmra.mxu0 %v428
        %v599 = vpop.f32.mrf.mxu0
        %v600 = vadd.f32 %v498, %v599
        %v601 = vpop.f32.mrf.mxu0
        %v602 = vadd.f32 %v502, %v601
        %603 = vdwg.mxu0
        %604 = vmatprep.subr.mxu0 %v492
        %605 = vmatpush1.msra.mxu0 %v491
        %606 = vmatprep.subr.mxu0 %v488
        %607 = vmatpush1.msra.mxu0 %v487
        %608 = vmatprep.subr.mxu0 %v484
        %609 = vmatpush1.msra.mxu0 %v483
        %610 = vmatprep.subr.mxu0 %v480
        %611 = vmatpush1.msra.mxu0 %v479
        %612 = vmatprep.subr.mxu0 %v476
        %613 = vmatpush1.msra.mxu0 %v475
        %614 = vmatprep.subr.mxu0 %v472
        %615 = vmatpush1.msra.mxu0 %v471
        %616 = vmatprep.subr.mxu0 %v468
        %617 = vmatpush1.msra.mxu0 %v467
        %618 = vmatprep.subr.mxu0 %v464
        %619 = vmatpush1.msra.mxu0 %v463
        %620 = vmatprep.subr.mxu0 %v460
        %621 = vmatpush1.msra.mxu0 %v459
        %622 = vmatprep.subr.mxu0 %v456
        %623 = vmatpush1.msra.mxu0 %v455
        %624 = vmatprep.subr.mxu0 %v452
        %625 = vmatpush1.msra.mxu0 %v451
        %626 = vmatprep.subr.mxu0 %v448
        %627 = vmatpush1.msra.mxu0 %v447
        %628 = vmatprep.subr.mxu0 %v444
        %629 = vmatpush1.msra.mxu0 %v443
        %630 = vmatprep.subr.mxu0 %v440
        %631 = vmatpush1.msra.mxu0 %v439
        %632 = vmatprep.subr.mxu0 %v436
        %633 = vmatpush1.msra.mxu0 %v435
        %634 = vmatprep.subr.mxu0 %v432
        %635 = vmatpush1.msra.mxu0 %v431
        %636 = vmatprep.subr.mxu0 0.0
        %637 = vmatpush2.msra.mxu0 0.0
        %638 = vmatprep.subr.mxu0 0.0
        %639 = vmatpush2.msra.mxu0 0.0
        %640 = vmatprep.subr.mxu0 0.0
        %641 = vmatpush2.msra.mxu0 0.0
        %642 = vmatprep.subr.mxu0 0.0
        %643 = vmatpush2.msra.mxu0 0.0
        %644 = vmatprep.subr.mxu0 0.0
        %645 = vmatpush2.msra.mxu0 0.0
        %646 = vmatprep.subr.mxu0 0.0
        %647 = vmatpush2.msra.mxu0 0.0
        %648 = vmatprep.subr.mxu0 0.0
        %649 = vmatpush2.msra.mxu0 0.0
        %650 = vmatprep.subr.mxu0 0.0
        %651 = vmatpush2.msra.mxu0 0.0
        %652 = vmatprep.subr.mxu0 0.0
        %653 = vmatpush2.msra.mxu0 0.0
        %654 = vmatprep.subr.mxu0 0.0
        %655 = vmatpush2.msra.mxu0 0.0
        %656 = vmatprep.subr.mxu0 0.0
        %657 = vmatpush2.msra.mxu0 0.0
        %658 = vmatprep.subr.mxu0 0.0
        %659 = vmatpush2.msra.mxu0 0.0
        %660 = vmatprep.subr.mxu0 0.0
        %661 = vmatpush2.msra.mxu0 0.0
        %662 = vmatprep.subr.mxu0 0.0
        %663 = vmatpush2.msra.mxu0 0.0
        %664 = vmatprep.subr.mxu0 0.0
        %665 = vmatpush2.msra.mxu0 0.0
        %666 = vmatprep.subr.mxu0 0.0
        %667 = vmatpush2.msra.mxu0 0.0
        %668 = vmatprep.mubr.f32.mxu0 0.0
        %669 = vmatmul.mubr.f32.gmra.mxu0 %v425
        %v670 = vpop.f32.mrf.mxu0
        %v671 = vadd.f32 %v506, %v670
        %v672 = vpop.f32.mrf.mxu0
        %v673 = vadd.f32 %v510, %v672
        %674 = vmatprep.mubr.f32.mxu0 0.0
        %675 = vmatmul.mubr.f32.gmra.mxu0 %v426
        %v676 = vpop.f32.mrf.mxu0
        %v677 = vadd.f32 %v506, %v676
        %v678 = vpop.f32.mrf.mxu0
        %v679 = vadd.f32 %v510, %v678
        %680 = vmatprep.mubr.f32.mxu0 0.0
        %681 = vmatmul.mubr.f32.gmra.mxu0 %v427
        %v682 = vpop.f32.mrf.mxu0
        %v683 = vadd.f32 %v506, %v682
        %v684 = vpop.f32.mrf.mxu0
        %v685 = vadd.f32 %v510, %v684
        %686 = vmatprep.mubr.f32.mxu0 0.0
        %687 = vmatmul.mubr.f32.gmra.mxu0 %v428
        %v688 = vpop.f32.mrf.mxu0
        %v689 = vadd.f32 %v506, %v688
        %v690 = vpop.f32.mrf.mxu0
        %v691 = vadd.f32 %v510, %v690
        %692 = vdwg.mxu0
        %693 = vst [vmem:[#allocation4] sm:$0xff] %v582
        %694 = vst [vmem:[#allocation4 + $0x8] sm:$0xff] %v584
        %695 = vst [vmem:[#allocation4 + $0x10] sm:$0xff] %v671
        %696 = vst [vmem:[#allocation4 + $0x18] sm:$0xff] %v673
        %697 = vst [vmem:[#allocation4 + $0x20] sm:$0xff] %v588
        %698 = vst [vmem:[#allocation4 + $0x28] sm:$0xff] %v590
        %699 = vst [vmem:[#allocation4 + $0x30] sm:$0xff] %v677
        %700 = vst [vmem:[#allocation4 + $0x38] sm:$0xff] %v679
        %701 = vst [vmem:[#allocation4 + $0x40] sm:$0xff] %v594
        %702 = vst [vmem:[#allocation4 + $0x48] sm:$0xff] %v596
        %703 = vst [vmem:[#allocation4 + $0x50] sm:$0xff] %v683
        %704 = vst [vmem:[#allocation4 + $0x58] sm:$0xff] %v685
        %705 = vst [vmem:[#allocation4 + $0x60] sm:$0xff] %v600
        %706 = vst [vmem:[#allocation4 + $0x68] sm:$0xff] %v602
        %707 = vst [vmem:[#allocation4 + $0x70] sm:$0xff] %v689
        %708 = vst [vmem:[#allocation4 + $0x78] sm:$0xff] %v691
        %v709 = vld [vmem:[#allocation2] sm:$0xff]
        %v710 = vld [vmem:[#allocation3] sm:$0xff]
        %v711 = vld [vmem:[#allocation4] sm:$0xff]
        %v712 = vld [vmem:[#allocation4 + $0x8] sm:$0xff]
        %v713 = vld [vmem:[#allocation4 + $0x10] sm:$0xff]
        %v714 = vld [vmem:[#allocation4 + $0x18] sm:$0xff]
        %v715 = vld [vmem:[#allocation13] sm:$0xff]
        %v716 = vld [vmem:[#allocation13 + $0x8] sm:$0xff]
        %v717 = vld [vmem:[#allocation13 + $0x10] sm:$0xff]
        %v718 = vld [vmem:[#allocation13 + $0x18] sm:$0xff]
        %v719 = vld [vmem:[#allocation13 + $0x20] sm:$0xff]
        %v720 = vld [vmem:[#allocation13 + $0x28] sm:$0xff]
        %v721 = vld [vmem:[#allocation13 + $0x30] sm:$0xff]
        %v722 = vld [vmem:[#allocation13 + $0x38] sm:$0xff]
        %v723 = vld [vmem:[#allocation13 + $0x40] sm:$0xff]
        %v724 = vld [vmem:[#allocation13 + $0x48] sm:$0xff]
        %v725 = vld [vmem:[#allocation13 + $0x50] sm:$0xff]
        %v726 = vld [vmem:[#allocation13 + $0x58] sm:$0xff]
        %v727 = vld [vmem:[#allocation13 + $0x60] sm:$0xff]
        %v728 = vld [vmem:[#allocation13 + $0x68] sm:$0xff]
        %v729 = vld [vmem:[#allocation13 + $0x70] sm:$0xff]
        %v730 = vld [vmem:[#allocation13 + $0x78] sm:$0xff]
        %v731 = vld [vmem:[#allocation13 + $0x80] sm:$0xff]
        %v732 = vld [vmem:[#allocation13 + $0x88] sm:$0xff]
        %v733 = vld [vmem:[#allocation13 + $0x90] sm:$0xff]
        %v734 = vld [vmem:[#allocation13 + $0x98] sm:$0xff]
        %v735 = vld [vmem:[#allocation13 + $0xa0] sm:$0xff]
        %v736 = vld [vmem:[#allocation13 + $0xa8] sm:$0xff]
        %v737 = vld [vmem:[#allocation13 + $0xb0] sm:$0xff]
        %v738 = vld [vmem:[#allocation13 + $0xb8] sm:$0xff]
        %v739 = vld [vmem:[#allocation13 + $0xc0] sm:$0xff]
        %v740 = vld [vmem:[#allocation13 + $0xc8] sm:$0xff]
        %v741 = vld [vmem:[#allocation13 + $0xd0] sm:$0xff]
        %v742 = vld [vmem:[#allocation13 + $0xd8] sm:$0xff]
        %v743 = vld [vmem:[#allocation13 + $0xe0] sm:$0xff]
        %v744 = vld [vmem:[#allocation13 + $0xe8] sm:$0xff]
        %v745 = vld [vmem:[#allocation13 + $0xf0] sm:$0xff]
        %v746 = vld [vmem:[#allocation13 + $0xf8] sm:$0xff]
        %v747 = vld [vmem:[#allocation13 + $0x100] sm:$0xff]
        %v748 = vld [vmem:[#allocation13 + $0x108] sm:$0xff]
        %v749 = vld [vmem:[#allocation13 + $0x110] sm:$0xff]
        %v750 = vld [vmem:[#allocation13 + $0x118] sm:$0xff]
        %v751 = vld [vmem:[#allocation13 + $0x120] sm:$0xff]
        %v752 = vld [vmem:[#allocation13 + $0x128] sm:$0xff]
        %v753 = vld [vmem:[#allocation13 + $0x130] sm:$0xff]
        %v754 = vld [vmem:[#allocation13 + $0x138] sm:$0xff]
        %v755 = vld [vmem:[#allocation13 + $0x140] sm:$0xff]
        %v756 = vld [vmem:[#allocation13 + $0x148] sm:$0xff]
        %v757 = vld [vmem:[#allocation13 + $0x150] sm:$0xff]
        %v758 = vld [vmem:[#allocation13 + $0x158] sm:$0xff]
        %v759 = vld [vmem:[#allocation13 + $0x160] sm:$0xff]
        %v760 = vld [vmem:[#allocation13 + $0x168] sm:$0xff]
        %v761 = vld [vmem:[#allocation13 + $0x170] sm:$0xff]
        %v762 = vld [vmem:[#allocation13 + $0x178] sm:$0xff]
        %v763 = vld [vmem:[#allocation13 + $0x180] sm:$0xff]
        %v764 = vld [vmem:[#allocation13 + $0x188] sm:$0xff]
        %v765 = vld [vmem:[#allocation13 + $0x190] sm:$0xff]
        %v766 = vld [vmem:[#allocation13 + $0x198] sm:$0xff]
        %v767 = vld [vmem:[#allocation13 + $0x1a0] sm:$0xff]
        %v768 = vld [vmem:[#allocation13 + $0x1a8] sm:$0xff]
        %v769 = vld [vmem:[#allocation13 + $0x1b0] sm:$0xff]
        %v770 = vld [vmem:[#allocation13 + $0x1b8] sm:$0xff]
        %v771 = vld [vmem:[#allocation13 + $0x1c0] sm:$0xff]
        %v772 = vld [vmem:[#allocation13 + $0x1c8] sm:$0xff]
        %v773 = vld [vmem:[#allocation13 + $0x1d0] sm:$0xff]
        %v774 = vld [vmem:[#allocation13 + $0x1d8] sm:$0xff]
        %v775 = vld [vmem:[#allocation13 + $0x1e0] sm:$0xff]
        %v776 = vld [vmem:[#allocation13 + $0x1e8] sm:$0xff]
        %v777 = vld [vmem:[#allocation13 + $0x1f0] sm:$0xff]
        %v778 = vld [vmem:[#allocation13 + $0x1f8] sm:$0xff]
        %779 = vmatprep.subr.mxu0 %v776
        %780 = vmatpush1.msra.mxu0 %v775
        %781 = vmatprep.subr.mxu0 %v772
        %782 = vmatpush1.msra.mxu0 %v771
        %783 = vmatprep.subr.mxu0 %v768
        %784 = vmatpush1.msra.mxu0 %v767
        %785 = vmatprep.subr.mxu0 %v764
        %786 = vmatpush1.msra.mxu0 %v763
        %787 = vmatprep.subr.mxu0 %v760
        %788 = vmatpush1.msra.mxu0 %v759
        %789 = vmatprep.subr.mxu0 %v756
        %790 = vmatpush1.msra.mxu0 %v755
        %791 = vmatprep.subr.mxu0 %v752
        %792 = vmatpush1.msra.mxu0 %v751
        %793 = vmatprep.subr.mxu0 %v748
        %794 = vmatpush1.msra.mxu0 %v747
        %795 = vmatprep.subr.mxu0 %v744
        %796 = vmatpush1.msra.mxu0 %v743
        %797 = vmatprep.subr.mxu0 %v740
        %798 = vmatpush1.msra.mxu0 %v739
        %799 = vmatprep.subr.mxu0 %v736
        %800 = vmatpush1.msra.mxu0 %v735
        %801 = vmatprep.subr.mxu0 %v732
        %802 = vmatpush1.msra.mxu0 %v731
        %803 = vmatprep.subr.mxu0 %v728
        %804 = vmatpush1.msra.mxu0 %v727
        %805 = vmatprep.subr.mxu0 %v724
        %806 = vmatpush1.msra.mxu0 %v723
        %807 = vmatprep.subr.mxu0 %v720
        %808 = vmatpush1.msra.mxu0 %v719
        %809 = vmatprep.subr.mxu0 %v716
        %810 = vmatpush1.msra.mxu0 %v715
        %811 = vmatprep.subr.mxu0 0.0
        %812 = vmatpush2.msra.mxu0 0.0
        %813 = vmatprep.subr.mxu0 0.0
        %814 = vmatpush2.msra.mxu0 0.0
        %815 = vmatprep.subr.mxu0 0.0
        %816 = vmatpush2.msra.mxu0 0.0
        %817 = vmatprep.subr.mxu0 0.0
        %818 = vmatpush2.msra.mxu0 0.0
        %819 = vmatprep.subr.mxu0 0.0
        %820 = vmatpush2.msra.mxu0 0.0
        %821 = vmatprep.subr.mxu0 0.0
        %822 = vmatpush2.msra.mxu0 0.0
        %823 = vmatprep.subr.mxu0 0.0
        %824 = vmatpush2.msra.mxu0 0.0
        %825 = vmatprep.subr.mxu0 0.0
        %826 = vmatpush2.msra.mxu0 0.0
        %827 = vmatprep.subr.mxu0 0.0
        %828 = vmatpush2.msra.mxu0 0.0
        %829 = vmatprep.subr.mxu0 0.0
        %830 = vmatpush2.msra.mxu0 0.0
        %831 = vmatprep.subr.mxu0 0.0
        %832 = vmatpush2.msra.mxu0 0.0
        %833 = vmatprep.subr.mxu0 0.0
        %834 = vmatpush2.msra.mxu0 0.0
        %835 = vmatprep.subr.mxu0 0.0
        %836 = vmatpush2.msra.mxu0 0.0
        %837 = vmatprep.subr.mxu0 0.0
        %838 = vmatpush2.msra.mxu0 0.0
        %839 = vmatprep.subr.mxu0 0.0
        %840 = vmatpush2.msra.mxu0 0.0
        %841 = vmatprep.subr.mxu0 0.0
        %842 = vmatpush2.msra.mxu0 0.0
        %843 = vmatprep.mubr.f32.mxu0 0.0
        %844 = vmatmul.mubr.f32.gmra.mxu0 %v709
        %v845 = vpop.f32.mrf.mxu0
        %v846 = vadd.f32 0.0, %v845
        %v847 = vpop.f32.mrf.mxu0
        %v848 = vadd.f32 0.0, %v847
        %849 = vdwg.mxu0
        %850 = vmatprep.subr.mxu0 %v778
        %851 = vmatpush1.msra.mxu0 %v777
        %852 = vmatprep.subr.mxu0 %v774
        %853 = vmatpush1.msra.mxu0 %v773
        %854 = vmatprep.subr.mxu0 %v770
        %855 = vmatpush1.msra.mxu0 %v769
        %856 = vmatprep.subr.mxu0 %v766
        %857 = vmatpush1.msra.mxu0 %v765
        %858 = vmatprep.subr.mxu0 %v762
        %859 = vmatpush1.msra.mxu0 %v761
        %860 = vmatprep.subr.mxu0 %v758
        %861 = vmatpush1.msra.mxu0 %v757
        %862 = vmatprep.subr.mxu0 %v754
        %863 = vmatpush1.msra.mxu0 %v753
        %864 = vmatprep.subr.mxu0 %v750
        %865 = vmatpush1.msra.mxu0 %v749
        %866 = vmatprep.subr.mxu0 %v746
        %867 = vmatpush1.msra.mxu0 %v745
        %868 = vmatprep.subr.mxu0 %v742
        %869 = vmatpush1.msra.mxu0 %v741
        %870 = vmatprep.subr.mxu0 %v738
        %871 = vmatpush1.msra.mxu0 %v737
        %872 = vmatprep.subr.mxu0 %v734
        %873 = vmatpush1.msra.mxu0 %v733
        %874 = vmatprep.subr.mxu0 %v730
        %875 = vmatpush1.msra.mxu0 %v729
        %876 = vmatprep.subr.mxu0 %v726
        %877 = vmatpush1.msra.mxu0 %v725
        %878 = vmatprep.subr.mxu0 %v722
        %879 = vmatpush1.msra.mxu0 %v721
        %880 = vmatprep.subr.mxu0 %v718
        %881 = vmatpush1.msra.mxu0 %v717
        %882 = vmatprep.subr.mxu0 0.0
        %883 = vmatpush2.msra.mxu0 0.0
        %884 = vmatprep.subr.mxu0 0.0
        %885 = vmatpush2.msra.mxu0 0.0
        %886 = vmatprep.subr.mxu0 0.0
        %887 = vmatpush2.msra.mxu0 0.0
        %888 = vmatprep.subr.mxu0 0.0
        %889 = vmatpush2.msra.mxu0 0.0
        %890 = vmatprep.subr.mxu0 0.0
        %891 = vmatpush2.msra.mxu0 0.0
        %892 = vmatprep.subr.mxu0 0.0
        %893 = vmatpush2.msra.mxu0 0.0
        %894 = vmatprep.subr.mxu0 0.0
        %895 = vmatpush2.msra.mxu0 0.0
        %896 = vmatprep.subr.mxu0 0.0
        %897 = vmatpush2.msra.mxu0 0.0
        %898 = vmatprep.subr.mxu0 0.0
        %899 = vmatpush2.msra.mxu0 0.0
        %900 = vmatprep.subr.mxu0 0.0
        %901 = vmatpush2.msra.mxu0 0.0
        %902 = vmatprep.subr.mxu0 0.0
        %903 = vmatpush2.msra.mxu0 0.0
        %904 = vmatprep.subr.mxu0 0.0
        %905 = vmatpush2.msra.mxu0 0.0
        %906 = vmatprep.subr.mxu0 0.0
        %907 = vmatpush2.msra.mxu0 0.0
        %908 = vmatprep.subr.mxu0 0.0
        %909 = vmatpush2.msra.mxu0 0.0
        %910 = vmatprep.subr.mxu0 0.0
        %911 = vmatpush2.msra.mxu0 0.0
        %912 = vmatprep.subr.mxu0 0.0
        %913 = vmatpush2.msra.mxu0 0.0
        %914 = vmatprep.mubr.f32.mxu0 0.0
        %915 = vmatmul.mubr.f32.gmra.mxu0 %v709
        %v916 = vpop.f32.mrf.mxu0
        %v917 = vadd.f32 0.0, %v916
        %v918 = vpop.f32.mrf.mxu0
        %v919 = vadd.f32 0.0, %v918
        %920 = vdwg.mxu0
        %v921 = vadd.f32 %v711, %v846
        %v922 = vadd.f32 %v712, %v848
        %v923 = vadd.f32 %v713, %v917
        %v924 = vadd.f32 %v714, %v919
        %v925 = vxor.u32 %v921, 2147483648
        %v926 = vmul.f32 %v925, 1.442695
        %v927 = vpow.pop %v926
        %v928 = vadd.f32 %v927, 1.0
        %v929 = vrcp.pop %v928
        %v930 = vmul.f32 1.0, %v929
        %v931 = vxor.u32 %v922, 2147483648
        %v932 = vmul.f32 %v931, 1.442695
        %v933 = vpow.pop %v932
        %v934 = vadd.f32 %v933, 1.0
        %v935 = vrcp.pop %v934
        %v936 = vmul.f32 1.0, %v935
        %v937 = vtanh.pop %v923
        %v938 = vxor.u32 %v924, 2147483648
        %v939 = vmul.f32 %v938, 1.442695
        %v940 = vpow.pop %v939
        %v941 = vadd.f32 %v940, 1.0
        %v942 = vrcp.pop %v941
        %v943 = vmul.f32 1.0, %v942
        %v944 = vmul.f32 %v936, %v710
        %v945 = vmul.f32 %v930, %v937
        %v946 = vadd.f32 %v944, %v945
        %v947 = vtanh.pop %v946
        %v948 = vmul.f32 %v943, %v947
        %949 = vst [vmem:[%s410] sm:$0xff] %v948
        %s950 = scalar_lea.vmem [#allocation4], 32
        %v951 = vld [vmem:[%s950] sm:$0xff]
        %v952 = vld [vmem:[%s950 + $0x8] sm:$0xff]
        %v953 = vld [vmem:[%s950 + $0x10] sm:$0xff]
        %v954 = vld [vmem:[%s950 + $0x18] sm:$0xff]
        %v955 = vld [vmem:[#allocation13] sm:$0xff]
        %v956 = vld [vmem:[#allocation13 + $0x8] sm:$0xff]
        %v957 = vld [vmem:[#allocation13 + $0x10] sm:$0xff]
        %v958 = vld [vmem:[#allocation13 + $0x18] sm:$0xff]
        %v959 = vld [vmem:[#allocation13 + $0x20] sm:$0xff]
        %v960 = vld [vmem:[#allocation13 + $0x28] sm:$0xff]
        %v961 = vld [vmem:[#allocation13 + $0x30] sm:$0xff]
        %v962 = vld [vmem:[#allocation13 + $0x38] sm:$0xff]
        %v963 = vld [vmem:[#allocation13 + $0x40] sm:$0xff]
        %v964 = vld [vmem:[#allocation13 + $0x48] sm:$0xff]
        %v965 = vld [vmem:[#allocation13 + $0x50] sm:$0xff]
        %v966 = vld [vmem:[#allocation13 + $0x58] sm:$0xff]
        %v967 = vld [vmem:[#allocation13 + $0x60] sm:$0xff]
        %v968 = vld [vmem:[#allocation13 + $0x68] sm:$0xff]
        %v969 = vld [vmem:[#allocation13 + $0x70] sm:$0xff]
        %v970 = vld [vmem:[#allocation13 + $0x78] sm:$0xff]
        %v971 = vld [vmem:[#allocation13 + $0x80] sm:$0xff]
        %v972 = vld [vmem:[#allocation13 + $0x88] sm:$0xff]
        %v973 = vld [vmem:[#allocation13 + $0x90] sm:$0xff]
        %v974 = vld [vmem:[#allocation13 + $0x98] sm:$0xff]
        %v975 = vld [vmem:[#allocation13 + $0xa0] sm:$0xff]
        %v976 = vld [vmem:[#allocation13 + $0xa8] sm:$0xff]
        %v977 = vld [vmem:[#allocation13 + $0xb0] sm:$0xff]
        %v978 = vld [vmem:[#allocation13 + $0xb8] sm:$0xff]
        %v979 = vld [vmem:[#allocation13 + $0xc0] sm:$0xff]
        %v980 = vld [vmem:[#allocation13 + $0xc8] sm:$0xff]
        %v981 = vld [vmem:[#allocation13 + $0xd0] sm:$0xff]
        %v982 = vld [vmem:[#allocation13 + $0xd8] sm:$0xff]
        %v983 = vld [vmem:[#allocation13 + $0xe0] sm:$0xff]
        %v984 = vld [vmem:[#allocation13 + $0xe8] sm:$0xff]
        %v985 = vld [vmem:[#allocation13 + $0xf0] sm:$0xff]
        %v986 = vld [vmem:[#allocation13 + $0xf8] sm:$0xff]
        %v987 = vld [vmem:[#allocation13 + $0x100] sm:$0xff]
        %v988 = vld [vmem:[#allocation13 + $0x108] sm:$0xff]
        %v989 = vld [vmem:[#allocation13 + $0x110] sm:$0xff]
        %v990 = vld [vmem:[#allocation13 + $0x118] sm:$0xff]
        %v991 = vld [vmem:[#allocation13 + $0x120] sm:$0xff]
        %v992 = vld [vmem:[#allocation13 + $0x128] sm:$0xff]
        %v993 = vld [vmem:[#allocation13 + $0x130] sm:$0xff]
        %v994 = vld [vmem:[#allocation13 + $0x138] sm:$0xff]
        %v995 = vld [vmem:[#allocation13 + $0x140] sm:$0xff]
        %v996 = vld [vmem:[#allocation13 + $0x148] sm:$0xff]
        %v997 = vld [vmem:[#allocation13 + $0x150] sm:$0xff]
        %v998 = vld [vmem:[#allocation13 + $0x158] sm:$0xff]
        %v999 = vld [vmem:[#allocation13 + $0x160] sm:$0xff]
        %v1000 = vld [vmem:[#allocation13 + $0x168] sm:$0xff]
        %v1001 = vld [vmem:[#allocation13 + $0x170] sm:$0xff]
        %v1002 = vld [vmem:[#allocation13 + $0x178] sm:$0xff]
        %v1003 = vld [vmem:[#allocation13 + $0x180] sm:$0xff]
        %v1004 = vld [vmem:[#allocation13 + $0x188] sm:$0xff]
        %v1005 = vld [vmem:[#allocation13 + $0x190] sm:$0xff]
        %v1006 = vld [vmem:[#allocation13 + $0x198] sm:$0xff]
        %v1007 = vld [vmem:[#allocation13 + $0x1a0] sm:$0xff]
        %v1008 = vld [vmem:[#allocation13 + $0x1a8] sm:$0xff]
        %v1009 = vld [vmem:[#allocation13 + $0x1b0] sm:$0xff]
        %v1010 = vld [vmem:[#allocation13 + $0x1b8] sm:$0xff]
        %v1011 = vld [vmem:[#allocation13 + $0x1c0] sm:$0xff]
        %v1012 = vld [vmem:[#allocation13 + $0x1c8] sm:$0xff]
        %v1013 = vld [vmem:[#allocation13 + $0x1d0] sm:$0xff]
        %v1014 = vld [vmem:[#allocation13 + $0x1d8] sm:$0xff]
        %v1015 = vld [vmem:[#allocation13 + $0x1e0] sm:$0xff]
        %v1016 = vld [vmem:[#allocation13 + $0x1e8] sm:$0xff]
        %v1017 = vld [vmem:[#allocation13 + $0x1f0] sm:$0xff]
        %v1018 = vld [vmem:[#allocation13 + $0x1f8] sm:$0xff]
        %1019 = vmatprep.subr.mxu0 %v1016
        %1020 = vmatpush1.msra.mxu0 %v1015
        %1021 = vmatprep.subr.mxu0 %v1012
        %1022 = vmatpush1.msra.mxu0 %v1011
        %1023 = vmatprep.subr.mxu0 %v1008
        %1024 = vmatpush1.msra.mxu0 %v1007
        %1025 = vmatprep.subr.mxu0 %v1004
        %1026 = vmatpush1.msra.mxu0 %v1003
        %1027 = vmatprep.subr.mxu0 %v1000
        %1028 = vmatpush1.msra.mxu0 %v999
        %1029 = vmatprep.subr.mxu0 %v996
        %1030 = vmatpush1.msra.mxu0 %v995
        %1031 = vmatprep.subr.mxu0 %v992
        %1032 = vmatpush1.msra.mxu0 %v991
        %1033 = vmatprep.subr.mxu0 %v988
        %1034 = vmatpush1.msra.mxu0 %v987
        %1035 = vmatprep.subr.mxu0 %v984
        %1036 = vmatpush1.msra.mxu0 %v983
        %1037 = vmatprep.subr.mxu0 %v980
        %1038 = vmatpush1.msra.mxu0 %v979
        %1039 = vmatprep.subr.mxu0 %v976
        %1040 = vmatpush1.msra.mxu0 %v975
        %1041 = vmatprep.subr.mxu0 %v972
        %1042 = vmatpush1.msra.mxu0 %v971
        %1043 = vmatprep.subr.mxu0 %v968
        %1044 = vmatpush1.msra.mxu0 %v967
        %1045 = vmatprep.subr.mxu0 %v964
        %1046 = vmatpush1.msra.mxu0 %v963
        %1047 = vmatprep.subr.mxu0 %v960
        %1048 = vmatpush1.msra.mxu0 %v959
        %1049 = vmatprep.subr.mxu0 %v956
        %1050 = vmatpush1.msra.mxu0 %v955
        %1051 = vmatprep.subr.mxu0 0.0
        %1052 = vmatpush2.msra.mxu0 0.0
        %1053 = vmatprep.subr.mxu0 0.0
        %1054 = vmatpush2.msra.mxu0 0.0
        %1055 = vmatprep.subr.mxu0 0.0
        %1056 = vmatpush2.msra.mxu0 0.0
        %1057 = vmatprep.subr.mxu0 0.0
        %1058 = vmatpush2.msra.mxu0 0.0
        %1059 = vmatprep.subr.mxu0 0.0
        %1060 = vmatpush2.msra.mxu0 0.0
        %1061 = vmatprep.subr.mxu0 0.0
        %1062 = vmatpush2.msra.mxu0 0.0
        %1063 = vmatprep.subr.mxu0 0.0
        %1064 = vmatpush2.msra.mxu0 0.0
        %1065 = vmatprep.subr.mxu0 0.0
        %1066 = vmatpush2.msra.mxu0 0.0
        %1067 = vmatprep.subr.mxu0 0.0
        %1068 = vmatpush2.msra.mxu0 0.0
        %1069 = vmatprep.subr.mxu0 0.0
        %1070 = vmatpush2.msra.mxu0 0.0
        %1071 = vmatprep.subr.mxu0 0.0
        %1072 = vmatpush2.msra.mxu0 0.0
        %1073 = vmatprep.subr.mxu0 0.0
        %1074 = vmatpush2.msra.mxu0 0.0
        %1075 = vmatprep.subr.mxu0 0.0
        %1076 = vmatpush2.msra.mxu0 0.0
        %1077 = vmatprep.subr.mxu0 0.0
        %1078 = vmatpush2.msra.mxu0 0.0
        %1079 = vmatprep.subr.mxu0 0.0
        %1080 = vmatpush2.msra.mxu0 0.0
        %1081 = vmatprep.subr.mxu0 0.0
        %1082 = vmatpush2.msra.mxu0 0.0
        %1083 = vmatprep.mubr.f32.mxu0 0.0
        %1084 = vmatmul.mubr.f32.gmra.mxu0 %v948
        %v1085 = vpop.f32.mrf.mxu0
        %v1086 = vadd.f32 0.0, %v1085
        %v1087 = vpop.f32.mrf.mxu0
        %v1088 = vadd.f32 0.0, %v1087
        %1089 = vdwg.mxu0
        %1090 = vmatprep.subr.mxu0 %v1018
        %1091 = vmatpush1.msra.mxu0 %v1017
        %1092 = vmatprep.subr.mxu0 %v1014
        %1093 = vmatpush1.msra.mxu0 %v1013
        %1094 = vmatprep.subr.mxu0 %v1010
        %1095 = vmatpush1.msra.mxu0 %v1009
        %1096 = vmatprep.subr.mxu0 %v1006
        %1097 = vmatpush1.msra.mxu0 %v1005
        %1098 = vmatprep.subr.mxu0 %v1002
        %1099 = vmatpush1.msra.mxu0 %v1001
        %1100 = vmatprep.subr.mxu0 %v998
        %1101 = vmatpush1.msra.mxu0 %v997
        %1102 = vmatprep.subr.mxu0 %v994
        %1103 = vmatpush1.msra.mxu0 %v993
        %1104 = vmatprep.subr.mxu0 %v990
        %1105 = vmatpush1.msra.mxu0 %v989
        %1106 = vmatprep.subr.mxu0 %v986
        %1107 = vmatpush1.msra.mxu0 %v985
        %1108 = vmatprep.subr.mxu0 %v982
        %1109 = vmatpush1.msra.mxu0 %v981
        %1110 = vmatprep.subr.mxu0 %v978
        %1111 = vmatpush1.msra.mxu0 %v977
        %1112 = vmatprep.subr.mxu0 %v974
        %1113 = vmatpush1.msra.mxu0 %v973
        %1114 = vmatprep.subr.mxu0 %v970
        %1115 = vmatpush1.msra.mxu0 %v969
        %1116 = vmatprep.subr.mxu0 %v966
        %1117 = vmatpush1.msra.mxu0 %v965
        %1118 = vmatprep.subr.mxu0 %v962
        %1119 = vmatpush1.msra.mxu0 %v961
        %1120 = vmatprep.subr.mxu0 %v958
        %1121 = vmatpush1.msra.mxu0 %v957
        %1122 = vmatprep.subr.mxu0 0.0
        %1123 = vmatpush2.msra.mxu0 0.0
        %1124 = vmatprep.subr.mxu0 0.0
        %1125 = vmatpush2.msra.mxu0 0.0
        %1126 = vmatprep.subr.mxu0 0.0
        %1127 = vmatpush2.msra.mxu0 0.0
        %1128 = vmatprep.subr.mxu0 0.0
        %1129 = vmatpush2.msra.mxu0 0.0
        %1130 = vmatprep.subr.mxu0 0.0
        %1131 = vmatpush2.msra.mxu0 0.0
        %1132 = vmatprep.subr.mxu0 0.0
        %1133 = vmatpush2.msra.mxu0 0.0
        %1134 = vmatprep.subr.mxu0 0.0
        %1135 = vmatpush2.msra.mxu0 0.0
        %1136 = vmatprep.subr.mxu0 0.0
        %1137 = vmatpush2.msra.mxu0 0.0
        %1138 = vmatprep.subr.mxu0 0.0
        %1139 = vmatpush2.msra.mxu0 0.0
        %1140 = vmatprep.subr.mxu0 0.0
        %1141 = vmatpush2.msra.mxu0 0.0
        %1142 = vmatprep.subr.mxu0 0.0
        %1143 = vmatpush2.msra.mxu0 0.0
        %1144 = vmatprep.subr.mxu0 0.0
        %1145 = vmatpush2.msra.mxu0 0.0
        %1146 = vmatprep.subr.mxu0 0.0
        %1147 = vmatpush2.msra.mxu0 0.0
        %1148 = vmatprep.subr.mxu0 0.0
        %1149 = vmatpush2.msra.mxu0 0.0
        %1150 = vmatprep.subr.mxu0 0.0
        %1151 = vmatpush2.msra.mxu0 0.0
        %1152 = vmatprep.subr.mxu0 0.0
        %1153 = vmatpush2.msra.mxu0 0.0
        %1154 = vmatprep.mubr.f32.mxu0 0.0
        %1155 = vmatmul.mubr.f32.gmra.mxu0 %v948
        %v1156 = vpop.f32.mrf.mxu0
        %v1157 = vadd.f32 0.0, %v1156
        %v1158 = vpop.f32.mrf.mxu0
        %v1159 = vadd.f32 0.0, %v1158
        %1160 = vdwg.mxu0
        %v1161 = vadd.f32 %v951, %v1086
        %v1162 = vadd.f32 %v952, %v1088
        %v1163 = vadd.f32 %v953, %v1157
        %v1164 = vadd.f32 %v954, %v1159
        %v1165 = vxor.u32 %v1161, 2147483648
        %v1166 = vmul.f32 %v1165, 1.442695
        %v1167 = vpow.pop %v1166
        %v1168 = vadd.f32 %v1167, 1.0
        %v1169 = vrcp.pop %v1168
        %v1170 = vmul.f32 1.0, %v1169
        %v1171 = vxor.u32 %v1162, 2147483648
        %v1172 = vmul.f32 %v1171, 1.442695
        %v1173 = vpow.pop %v1172
        %v1174 = vadd.f32 %v1173, 1.0
        %v1175 = vrcp.pop %v1174
        %v1176 = vmul.f32 1.0, %v1175
        %v1177 = vtanh.pop %v1163
        %v1178 = vxor.u32 %v1164, 2147483648
        %v1179 = vmul.f32 %v1178, 1.442695
        %v1180 = vpow.pop %v1179
        %v1181 = vadd.f32 %v1180, 1.0
        %v1182 = vrcp.pop %v1181
        %v1183 = vmul.f32 1.0, %v1182
        %v1184 = vmul.f32 %v1176, %v946
        %v1185 = vmul.f32 %v1170, %v1177
        %v1186 = vadd.f32 %v1184, %v1185
        %v1187 = vtanh.pop %v1186
        %v1188 = vmul.f32 %v1183, %v1187
        %s1189 = scalar_lea.vmem %s410, 8 [#allocation14]
        %1190 = vst [vmem:[%s1189] sm:$0xff] %v1188
        %s1191 = scalar_lea.vmem [#allocation4], 64
        %v1192 = vld [vmem:[%s1191] sm:$0xff]
        %v1193 = vld [vmem:[%s1191 + $0x8] sm:$0xff]
        %v1194 = vld [vmem:[%s1191 + $0x10] sm:$0xff]
        %v1195 = vld [vmem:[%s1191 + $0x18] sm:$0xff]
        %v1196 = vld [vmem:[#allocation13] sm:$0xff]
        %v1197 = vld [vmem:[#allocation13 + $0x8] sm:$0xff]
        %v1198 = vld [vmem:[#allocation13 + $0x10] sm:$0xff]
        %v1199 = vld [vmem:[#allocation13 + $0x18] sm:$0xff]
        %v1200 = vld [vmem:[#allocation13 + $0x20] sm:$0xff]
        %v1201 = vld [vmem:[#allocation13 + $0x28] sm:$0xff]
        %v1202 = vld [vmem:[#allocation13 + $0x30] sm:$0xff]
        %v1203 = vld [vmem:[#allocation13 + $0x38] sm:$0xff]
        %v1204 = vld [vmem:[#allocation13 + $0x40] sm:$0xff]
        %v1205 = vld [vmem:[#allocation13 + $0x48] sm:$0xff]
        %v1206 = vld [vmem:[#allocation13 + $0x50] sm:$0xff]
        %v1207 = vld [vmem:[#allocation13 + $0x58] sm:$0xff]
        %v1208 = vld [vmem:[#allocation13 + $0x60] sm:$0xff]
        %v1209 = vld [vmem:[#allocation13 + $0x68] sm:$0xff]
        %v1210 = vld [vmem:[#allocation13 + $0x70] sm:$0xff]
        %v1211 = vld [vmem:[#allocation13 + $0x78] sm:$0xff]
        %v1212 = vld [vmem:[#allocation13 + $0x80] sm:$0xff]
        %v1213 = vld [vmem:[#allocation13 + $0x88] sm:$0xff]
        %v1214 = vld [vmem:[#allocation13 + $0x90] sm:$0xff]
        %v1215 = vld [vmem:[#allocation13 + $0x98] sm:$0xff]
        %v1216 = vld [vmem:[#allocation13 + $0xa0] sm:$0xff]
        %v1217 = vld [vmem:[#allocation13 + $0xa8] sm:$0xff]
        %v1218 = vld [vmem:[#allocation13 + $0xb0] sm:$0xff]
        %v1219 = vld [vmem:[#allocation13 + $0xb8] sm:$0xff]
        %v1220 = vld [vmem:[#allocation13 + $0xc0] sm:$0xff]
        %v1221 = vld [vmem:[#allocation13 + $0xc8] sm:$0xff]
        %v1222 = vld [vmem:[#allocation13 + $0xd0] sm:$0xff]
        %v1223 = vld [vmem:[#allocation13 + $0xd8] sm:$0xff]
        %v1224 = vld [vmem:[#allocation13 + $0xe0] sm:$0xff]
        %v1225 = vld [vmem:[#allocation13 + $0xe8] sm:$0xff]
        %v1226 = vld [vmem:[#allocation13 + $0xf0] sm:$0xff]
        %v1227 = vld [vmem:[#allocation13 + $0xf8] sm:$0xff]
        %v1228 = vld [vmem:[#allocation13 + $0x100] sm:$0xff]
        %v1229 = vld [vmem:[#allocation13 + $0x108] sm:$0xff]
        %v1230 = vld [vmem:[#allocation13 + $0x110] sm:$0xff]
        %v1231 = vld [vmem:[#allocation13 + $0x118] sm:$0xff]
        %v1232 = vld [vmem:[#allocation13 + $0x120] sm:$0xff]
        %v1233 = vld [vmem:[#allocation13 + $0x128] sm:$0xff]
        %v1234 = vld [vmem:[#allocation13 + $0x130] sm:$0xff]
        %v1235 = vld [vmem:[#allocation13 + $0x138] sm:$0xff]
        %v1236 = vld [vmem:[#allocation13 + $0x140] sm:$0xff]
        %v1237 = vld [vmem:[#allocation13 + $0x148] sm:$0xff]
        %v1238 = vld [vmem:[#allocation13 + $0x150] sm:$0xff]
        %v1239 = vld [vmem:[#allocation13 + $0x158] sm:$0xff]
        %v1240 = vld [vmem:[#allocation13 + $0x160] sm:$0xff]
        %v1241 = vld [vmem:[#allocation13 + $0x168] sm:$0xff]
        %v1242 = vld [vmem:[#allocation13 + $0x170] sm:$0xff]
        %v1243 = vld [vmem:[#allocation13 + $0x178] sm:$0xff]
        %v1244 = vld [vmem:[#allocation13 + $0x180] sm:$0xff]
        %v1245 = vld [vmem:[#allocation13 + $0x188] sm:$0xff]
        %v1246 = vld [vmem:[#allocation13 + $0x190] sm:$0xff]
        %v1247 = vld [vmem:[#allocation13 + $0x198] sm:$0xff]
        %v1248 = vld [vmem:[#allocation13 + $0x1a0] sm:$0xff]
        %v1249 = vld [vmem:[#allocation13 + $0x1a8] sm:$0xff]
        %v1250 = vld [vmem:[#allocation13 + $0x1b0] sm:$0xff]
        %v1251 = vld [vmem:[#allocation13 + $0x1b8] sm:$0xff]
        %v1252 = vld [vmem:[#allocation13 + $0x1c0] sm:$0xff]
        %v1253 = vld [vmem:[#allocation13 + $0x1c8] sm:$0xff]
        %v1254 = vld [vmem:[#allocation13 + $0x1d0] sm:$0xff]
        %v1255 = vld [vmem:[#allocation13 + $0x1d8] sm:$0xff]
        %v1256 = vld [vmem:[#allocation13 + $0x1e0] sm:$0xff]
        %v1257 = vld [vmem:[#allocation13 + $0x1e8] sm:$0xff]
        %v1258 = vld [vmem:[#allocation13 + $0x1f0] sm:$0xff]
        %v1259 = vld [vmem:[#allocation13 + $0x1f8] sm:$0xff]
        %1260 = vmatprep.subr.mxu0 %v1257
        %1261 = vmatpush1.msra.mxu0 %v1256
        %1262 = vmatprep.subr.mxu0 %v1253
        %1263 = vmatpush1.msra.mxu0 %v1252
        %1264 = vmatprep.subr.mxu0 %v1249
        %1265 = vmatpush1.msra.mxu0 %v1248
        %1266 = vmatprep.subr.mxu0 %v1245
        %1267 = vmatpush1.msra.mxu0 %v1244
        %1268 = vmatprep.subr.mxu0 %v1241
        %1269 = vmatpush1.msra.mxu0 %v1240
        %1270 = vmatprep.subr.mxu0 %v1237
        %1271 = vmatpush1.msra.mxu0 %v1236
        %1272 = vmatprep.subr.mxu0 %v1233
        %1273 = vmatpush1.msra.mxu0 %v1232
        %1274 = vmatprep.subr.mxu0 %v1229
        %1275 = vmatpush1.msra.mxu0 %v1228
        %1276 = vmatprep.subr.mxu0 %v1225
        %1277 = vmatpush1.msra.mxu0 %v1224
        %1278 = vmatprep.subr.mxu0 %v1221
        %1279 = vmatpush1.msra.mxu0 %v1220
        %1280 = vmatprep.subr.mxu0 %v1217
        %1281 = vmatpush1.msra.mxu0 %v1216
        %1282 = vmatprep.subr.mxu0 %v1213
        %1283 = vmatpush1.msra.mxu0 %v1212
        %1284 = vmatprep.subr.mxu0 %v1209
        %1285 = vmatpush1.msra.mxu0 %v1208
        %1286 = vmatprep.subr.mxu0 %v1205
        %1287 = vmatpush1.msra.mxu0 %v1204
        %1288 = vmatprep.subr.mxu0 %v1201
        %1289 = vmatpush1.msra.mxu0 %v1200
        %1290 = vmatprep.subr.mxu0 %v1197
        %1291 = vmatpush1.msra.mxu0 %v1196
        %1292 = vmatprep.subr.mxu0 0.0
        %1293 = vmatpush2.msra.mxu0 0.0
        %1294 = vmatprep.subr.mxu0 0.0
        %1295 = vmatpush2.msra.mxu0 0.0
        %1296 = vmatprep.subr.mxu0 0.0
        %1297 = vmatpush2.msra.mxu0 0.0
        %1298 = vmatprep.subr.mxu0 0.0
        %1299 = vmatpush2.msra.mxu0 0.0
        %1300 = vmatprep.subr.mxu0 0.0
        %1301 = vmatpush2.msra.mxu0 0.0
        %1302 = vmatprep.subr.mxu0 0.0
        %1303 = vmatpush2.msra.mxu0 0.0
        %1304 = vmatprep.subr.mxu0 0.0
        %1305 = vmatpush2.msra.mxu0 0.0
        %1306 = vmatprep.subr.mxu0 0.0
        %1307 = vmatpush2.msra.mxu0 0.0
        %1308 = vmatprep.subr.mxu0 0.0
        %1309 = vmatpush2.msra.mxu0 0.0
        %1310 = vmatprep.subr.mxu0 0.0
        %1311 = vmatpush2.msra.mxu0 0.0
        %1312 = vmatprep.subr.mxu0 0.0
        %1313 = vmatpush2.msra.mxu0 0.0
        %1314 = vmatprep.subr.mxu0 0.0
        %1315 = vmatpush2.msra.mxu0 0.0
        %1316 = vmatprep.subr.mxu0 0.0
        %1317 = vmatpush2.msra.mxu0 0.0
        %1318 = vmatprep.subr.mxu0 0.0
        %1319 = vmatpush2.msra.mxu0 0.0
        %1320 = vmatprep.subr.mxu0 0.0
        %1321 = vmatpush2.msra.mxu0 0.0
        %1322 = vmatprep.subr.mxu0 0.0
        %1323 = vmatpush2.msra.mxu0 0.0
        %1324 = vmatprep.mubr.f32.mxu0 0.0
        %1325 = vmatmul.mubr.f32.gmra.mxu0 %v1188
        %v1326 = vpop.f32.mrf.mxu0
        %v1327 = vadd.f32 0.0, %v1326
        %v1328 = vpop.f32.mrf.mxu0
        %v1329 = vadd.f32 0.0, %v1328
        %1330 = vdwg.mxu0
        %1331 = vmatprep.subr.mxu0 %v1259
        %1332 = vmatpush1.msra.mxu0 %v1258
        %1333 = vmatprep.subr.mxu0 %v1255
        %1334 = vmatpush1.msra.mxu0 %v1254
        %1335 = vmatprep.subr.mxu0 %v1251
        %1336 = vmatpush1.msra.mxu0 %v1250
        %1337 = vmatprep.subr.mxu0 %v1247
        %1338 = vmatpush1.msra.mxu0 %v1246
        %1339 = vmatprep.subr.mxu0 %v1243
        %1340 = vmatpush1.msra.mxu0 %v1242
        %1341 = vmatprep.subr.mxu0 %v1239
        %1342 = vmatpush1.msra.mxu0 %v1238
        %1343 = vmatprep.subr.mxu0 %v1235
        %1344 = vmatpush1.msra.mxu0 %v1234
        %1345 = vmatprep.subr.mxu0 %v1231
        %1346 = vmatpush1.msra.mxu0 %v1230
        %1347 = vmatprep.subr.mxu0 %v1227
        %1348 = vmatpush1.msra.mxu0 %v1226
        %1349 = vmatprep.subr.mxu0 %v1223
        %1350 = vmatpush1.msra.mxu0 %v1222
        %1351 = vmatprep.subr.mxu0 %v1219
        %1352 = vmatpush1.msra.mxu0 %v1218
        %1353 = vmatprep.subr.mxu0 %v1215
        %1354 = vmatpush1.msra.mxu0 %v1214
        %1355 = vmatprep.subr.mxu0 %v1211
        %1356 = vmatpush1.msra.mxu0 %v1210
        %1357 = vmatprep.subr.mxu0 %v1207
        %1358 = vmatpush1.msra.mxu0 %v1206
        %1359 = vmatprep.subr.mxu0 %v1203
        %1360 = vmatpush1.msra.mxu0 %v1202
        %1361 = vmatprep.subr.mxu0 %v1199
        %1362 = vmatpush1.msra.mxu0 %v1198
        %1363 = vmatprep.subr.mxu0 0.0
        %1364 = vmatpush2.msra.mxu0 0.0
        %1365 = vmatprep.subr.mxu0 0.0
        %1366 = vmatpush2.msra.mxu0 0.0
        %1367 = vmatprep.subr.mxu0 0.0
        %1368 = vmatpush2.msra.mxu0 0.0
        %1369 = vmatprep.subr.mxu0 0.0
        %1370 = vmatpush2.msra.mxu0 0.0
        %1371 = vmatprep.subr.mxu0 0.0
        %1372 = vmatpush2.msra.mxu0 0.0
        %1373 = vmatprep.subr.mxu0 0.0
        %1374 = vmatpush2.msra.mxu0 0.0
        %1375 = vmatprep.subr.mxu0 0.0
        %1376 = vmatpush2.msra.mxu0 0.0
        %1377 = vmatprep.subr.mxu0 0.0
        %1378 = vmatpush2.msra.mxu0 0.0
        %1379 = vmatprep.subr.mxu0 0.0
        %1380 = vmatpush2.msra.mxu0 0.0
        %1381 = vmatprep.subr.mxu0 0.0
        %1382 = vmatpush2.msra.mxu0 0.0
        %1383 = vmatprep.subr.mxu0 0.0
        %1384 = vmatpush2.msra.mxu0 0.0
        %1385 = vmatprep.subr.mxu0 0.0
        %1386 = vmatpush2.msra.mxu0 0.0
        %1387 = vmatprep.subr.mxu0 0.0
        %1388 = vmatpush2.msra.mxu0 0.0
        %1389 = vmatprep.subr.mxu0 0.0
        %1390 = vmatpush2.msra.mxu0 0.0
        %1391 = vmatprep.subr.mxu0 0.0
        %1392 = vmatpush2.msra.mxu0 0.0
        %1393 = vmatprep.subr.mxu0 0.0
        %1394 = vmatpush2.msra.mxu0 0.0
        %1395 = vmatprep.mubr.f32.mxu0 0.0
        %1396 = vmatmul.mubr.f32.gmra.mxu0 %v1188
        %v1397 = vpop.f32.mrf.mxu0
        %v1398 = vadd.f32 0.0, %v1397
        %v1399 = vpop.f32.mrf.mxu0
        %v1400 = vadd.f32 0.0, %v1399
        %1401 = vdwg.mxu0
        %v1402 = vadd.f32 %v1192, %v1327
        %v1403 = vadd.f32 %v1193, %v1329
        %v1404 = vadd.f32 %v1194, %v1398
        %v1405 = vadd.f32 %v1195, %v1400
        %v1406 = vxor.u32 %v1402, 2147483648
        %v1407 = vmul.f32 %v1406, 1.442695
        %v1408 = vpow.pop %v1407
        %v1409 = vadd.f32 %v1408, 1.0
        %v1410 = vrcp.pop %v1409
        %v1411 = vmul.f32 1.0, %v1410
        %v1412 = vxor.u32 %v1403, 2147483648
        %v1413 = vmul.f32 %v1412, 1.442695
        %v1414 = vpow.pop %v1413
        %v1415 = vadd.f32 %v1414, 1.0
        %v1416 = vrcp.pop %v1415
        %v1417 = vmul.f32 1.0, %v1416
        %v1418 = vtanh.pop %v1404
        %v1419 = vxor.u32 %v1405, 2147483648
        %v1420 = vmul.f32 %v1419, 1.442695
        %v1421 = vpow.pop %v1420
        %v1422 = vadd.f32 %v1421, 1.0
        %v1423 = vrcp.pop %v1422
        %v1424 = vmul.f32 1.0, %v1423
        %v1425 = vmul.f32 %v1417, %v1186
        %v1426 = vmul.f32 %v1411, %v1418
        %v1427 = vadd.f32 %v1425, %v1426
        %v1428 = vtanh.pop %v1427
        %v1429 = vmul.f32 %v1424, %v1428
        %s1430 = scalar_lea.vmem %s410, 16 [#allocation14]
        %1431 = vst [vmem:[%s1430] sm:$0xff] %v1429
        %s1432 = scalar_lea.vmem [#allocation4], 96
        %v1433 = vld [vmem:[%s1432] sm:$0xff]
        %v1434 = vld [vmem:[%s1432 + $0x8] sm:$0xff]
        %v1435 = vld [vmem:[%s1432 + $0x10] sm:$0xff]
        %v1436 = vld [vmem:[%s1432 + $0x18] sm:$0xff]
        %v1437 = vld [vmem:[#allocation13] sm:$0xff]
        %v1438 = vld [vmem:[#allocation13 + $0x8] sm:$0xff]
        %v1439 = vld [vmem:[#allocation13 + $0x10] sm:$0xff]
        %v1440 = vld [vmem:[#allocation13 + $0x18] sm:$0xff]
        %v1441 = vld [vmem:[#allocation13 + $0x20] sm:$0xff]
        %v1442 = vld [vmem:[#allocation13 + $0x28] sm:$0xff]
        %v1443 = vld [vmem:[#allocation13 + $0x30] sm:$0xff]
        %v1444 = vld [vmem:[#allocation13 + $0x38] sm:$0xff]
        %v1445 = vld [vmem:[#allocation13 + $0x40] sm:$0xff]
        %v1446 = vld [vmem:[#allocation13 + $0x48] sm:$0xff]
        %v1447 = vld [vmem:[#allocation13 + $0x50] sm:$0xff]
        %v1448 = vld [vmem:[#allocation13 + $0x58] sm:$0xff]
        %v1449 = vld [vmem:[#allocation13 + $0x60] sm:$0xff]
        %v1450 = vld [vmem:[#allocation13 + $0x68] sm:$0xff]
        %v1451 = vld [vmem:[#allocation13 + $0x70] sm:$0xff]
        %v1452 = vld [vmem:[#allocation13 + $0x78] sm:$0xff]
        %v1453 = vld [vmem:[#allocation13 + $0x80] sm:$0xff]
        %v1454 = vld [vmem:[#allocation13 + $0x88] sm:$0xff]
        %v1455 = vld [vmem:[#allocation13 + $0x90] sm:$0xff]
        %v1456 = vld [vmem:[#allocation13 + $0x98] sm:$0xff]
        %v1457 = vld [vmem:[#allocation13 + $0xa0] sm:$0xff]
        %v1458 = vld [vmem:[#allocation13 + $0xa8] sm:$0xff]
        %v1459 = vld [vmem:[#allocation13 + $0xb0] sm:$0xff]
        %v1460 = vld [vmem:[#allocation13 + $0xb8] sm:$0xff]
        %v1461 = vld [vmem:[#allocation13 + $0xc0] sm:$0xff]
        %v1462 = vld [vmem:[#allocation13 + $0xc8] sm:$0xff]
        %v1463 = vld [vmem:[#allocation13 + $0xd0] sm:$0xff]
        %v1464 = vld [vmem:[#allocation13 + $0xd8] sm:$0xff]
        %v1465 = vld [vmem:[#allocation13 + $0xe0] sm:$0xff]
        %v1466 = vld [vmem:[#allocation13 + $0xe8] sm:$0xff]
        %v1467 = vld [vmem:[#allocation13 + $0xf0] sm:$0xff]
        %v1468 = vld [vmem:[#allocation13 + $0xf8] sm:$0xff]
        %v1469 = vld [vmem:[#allocation13 + $0x100] sm:$0xff]
        %v1470 = vld [vmem:[#allocation13 + $0x108] sm:$0xff]
        %v1471 = vld [vmem:[#allocation13 + $0x110] sm:$0xff]
        %v1472 = vld [vmem:[#allocation13 + $0x118] sm:$0xff]
        %v1473 = vld [vmem:[#allocation13 + $0x120] sm:$0xff]
        %v1474 = vld [vmem:[#allocation13 + $0x128] sm:$0xff]
        %v1475 = vld [vmem:[#allocation13 + $0x130] sm:$0xff]
        %v1476 = vld [vmem:[#allocation13 + $0x138] sm:$0xff]
        %v1477 = vld [vmem:[#allocation13 + $0x140] sm:$0xff]
        %v1478 = vld [vmem:[#allocation13 + $0x148] sm:$0xff]
        %v1479 = vld [vmem:[#allocation13 + $0x150] sm:$0xff]
        %v1480 = vld [vmem:[#allocation13 + $0x158] sm:$0xff]
        %v1481 = vld [vmem:[#allocation13 + $0x160] sm:$0xff]
        %v1482 = vld [vmem:[#allocation13 + $0x168] sm:$0xff]
        %v1483 = vld [vmem:[#allocation13 + $0x170] sm:$0xff]
        %v1484 = vld [vmem:[#allocation13 + $0x178] sm:$0xff]
        %v1485 = vld [vmem:[#allocation13 + $0x180] sm:$0xff]
        %v1486 = vld [vmem:[#allocation13 + $0x188] sm:$0xff]
        %v1487 = vld [vmem:[#allocation13 + $0x190] sm:$0xff]
        %v1488 = vld [vmem:[#allocation13 + $0x198] sm:$0xff]
        %v1489 = vld [vmem:[#allocation13 + $0x1a0] sm:$0xff]
        %v1490 = vld [vmem:[#allocation13 + $0x1a8] sm:$0xff]
        %v1491 = vld [vmem:[#allocation13 + $0x1b0] sm:$0xff]
        %v1492 = vld [vmem:[#allocation13 + $0x1b8] sm:$0xff]
        %v1493 = vld [vmem:[#allocation13 + $0x1c0] sm:$0xff]
        %v1494 = vld [vmem:[#allocation13 + $0x1c8] sm:$0xff]
        %v1495 = vld [vmem:[#allocation13 + $0x1d0] sm:$0xff]
        %v1496 = vld [vmem:[#allocation13 + $0x1d8] sm:$0xff]
        %v1497 = vld [vmem:[#allocation13 + $0x1e0] sm:$0xff]
        %v1498 = vld [vmem:[#allocation13 + $0x1e8] sm:$0xff]
        %v1499 = vld [vmem:[#allocation13 + $0x1f0] sm:$0xff]
        %v1500 = vld [vmem:[#allocation13 + $0x1f8] sm:$0xff]
        %1501 = vmatprep.subr.mxu0 %v1498
        %1502 = vmatpush1.msra.mxu0 %v1497
        %1503 = vmatprep.subr.mxu0 %v1494
        %1504 = vmatpush1.msra.mxu0 %v1493
        %1505 = vmatprep.subr.mxu0 %v1490
        %1506 = vmatpush1.msra.mxu0 %v1489
        %1507 = vmatprep.subr.mxu0 %v1486
        %1508 = vmatpush1.msra.mxu0 %v1485
        %1509 = vmatprep.subr.mxu0 %v1482
        %1510 = vmatpush1.msra.mxu0 %v1481
        %1511 = vmatprep.subr.mxu0 %v1478
        %1512 = vmatpush1.msra.mxu0 %v1477
        %1513 = vmatprep.subr.mxu0 %v1474
        %1514 = vmatpush1.msra.mxu0 %v1473
        %1515 = vmatprep.subr.mxu0 %v1470
        %1516 = vmatpush1.msra.mxu0 %v1469
        %1517 = vmatprep.subr.mxu0 %v1466
        %1518 = vmatpush1.msra.mxu0 %v1465
        %1519 = vmatprep.subr.mxu0 %v1462
        %1520 = vmatpush1.msra.mxu0 %v1461
        %1521 = vmatprep.subr.mxu0 %v1458
        %1522 = vmatpush1.msra.mxu0 %v1457
        %1523 = vmatprep.subr.mxu0 %v1454
        %1524 = vmatpush1.msra.mxu0 %v1453
        %1525 = vmatprep.subr.mxu0 %v1450
        %1526 = vmatpush1.msra.mxu0 %v1449
        %1527 = vmatprep.subr.mxu0 %v1446
        %1528 = vmatpush1.msra.mxu0 %v1445
        %1529 = vmatprep.subr.mxu0 %v1442
        %1530 = vmatpush1.msra.mxu0 %v1441
        %1531 = vmatprep.subr.mxu0 %v1438
        %1532 = vmatpush1.msra.mxu0 %v1437
        %1533 = vmatprep.subr.mxu0 0.0
        %1534 = vmatpush2.msra.mxu0 0.0
        %1535 = vmatprep.subr.mxu0 0.0
        %1536 = vmatpush2.msra.mxu0 0.0
        %1537 = vmatprep.subr.mxu0 0.0
        %1538 = vmatpush2.msra.mxu0 0.0
        %1539 = vmatprep.subr.mxu0 0.0
        %1540 = vmatpush2.msra.mxu0 0.0
        %1541 = vmatprep.subr.mxu0 0.0
        %1542 = vmatpush2.msra.mxu0 0.0
        %1543 = vmatprep.subr.mxu0 0.0
        %1544 = vmatpush2.msra.mxu0 0.0
        %1545 = vmatprep.subr.mxu0 0.0
        %1546 = vmatpush2.msra.mxu0 0.0
        %1547 = vmatprep.subr.mxu0 0.0
        %1548 = vmatpush2.msra.mxu0 0.0
        %1549 = vmatprep.subr.mxu0 0.0
        %1550 = vmatpush2.msra.mxu0 0.0
        %1551 = vmatprep.subr.mxu0 0.0
        %1552 = vmatpush2.msra.mxu0 0.0
        %1553 = vmatprep.subr.mxu0 0.0
        %1554 = vmatpush2.msra.mxu0 0.0
        %1555 = vmatprep.subr.mxu0 0.0
        %1556 = vmatpush2.msra.mxu0 0.0
        %1557 = vmatprep.subr.mxu0 0.0
        %1558 = vmatpush2.msra.mxu0 0.0
        %1559 = vmatprep.subr.mxu0 0.0
        %1560 = vmatpush2.msra.mxu0 0.0
        %1561 = vmatprep.subr.mxu0 0.0
        %1562 = vmatpush2.msra.mxu0 0.0
        %1563 = vmatprep.subr.mxu0 0.0
        %1564 = vmatpush2.msra.mxu0 0.0
        %1565 = vmatprep.mubr.f32.mxu0 0.0
        %1566 = vmatmul.mubr.f32.gmra.mxu0 %v1429
        %v1567 = vpop.f32.mrf.mxu0
        %v1568 = vadd.f32 0.0, %v1567
        %v1569 = vpop.f32.mrf.mxu0
        %v1570 = vadd.f32 0.0, %v1569
        %1571 = vdwg.mxu0
        %1572 = vmatprep.subr.mxu0 %v1500
        %1573 = vmatpush1.msra.mxu0 %v1499
        %1574 = vmatprep.subr.mxu0 %v1496
        %1575 = vmatpush1.msra.mxu0 %v1495
        %1576 = vmatprep.subr.mxu0 %v1492
        %1577 = vmatpush1.msra.mxu0 %v1491
        %1578 = vmatprep.subr.mxu0 %v1488
        %1579 = vmatpush1.msra.mxu0 %v1487
        %1580 = vmatprep.subr.mxu0 %v1484
        %1581 = vmatpush1.msra.mxu0 %v1483
        %1582 = vmatprep.subr.mxu0 %v1480
        %1583 = vmatpush1.msra.mxu0 %v1479
        %1584 = vmatprep.subr.mxu0 %v1476
        %1585 = vmatpush1.msra.mxu0 %v1475
        %1586 = vmatprep.subr.mxu0 %v1472
        %1587 = vmatpush1.msra.mxu0 %v1471
        %1588 = vmatprep.subr.mxu0 %v1468
        %1589 = vmatpush1.msra.mxu0 %v1467
        %1590 = vmatprep.subr.mxu0 %v1464
        %1591 = vmatpush1.msra.mxu0 %v1463
        %1592 = vmatprep.subr.mxu0 %v1460
        %1593 = vmatpush1.msra.mxu0 %v1459
        %1594 = vmatprep.subr.mxu0 %v1456
        %1595 = vmatpush1.msra.mxu0 %v1455
        %1596 = vmatprep.subr.mxu0 %v1452
        %1597 = vmatpush1.msra.mxu0 %v1451
        %1598 = vmatprep.subr.mxu0 %v1448
        %1599 = vmatpush1.msra.mxu0 %v1447
        %1600 = vmatprep.subr.mxu0 %v1444
        %1601 = vmatpush1.msra.mxu0 %v1443
        %1602 = vmatprep.subr.mxu0 %v1440
        %1603 = vmatpush1.msra.mxu0 %v1439
        %1604 = vmatprep.subr.mxu0 0.0
        %1605 = vmatpush2.msra.mxu0 0.0
        %1606 = vmatprep.subr.mxu0 0.0
        %1607 = vmatpush2.msra.mxu0 0.0
        %1608 = vmatprep.subr.mxu0 0.0
        %1609 = vmatpush2.msra.mxu0 0.0
        %1610 = vmatprep.subr.mxu0 0.0
        %1611 = vmatpush2.msra.mxu0 0.0
        %1612 = vmatprep.subr.mxu0 0.0
        %1613 = vmatpush2.msra.mxu0 0.0
        %1614 = vmatprep.subr.mxu0 0.0
        %1615 = vmatpush2.msra.mxu0 0.0
        %1616 = vmatprep.subr.mxu0 0.0
        %1617 = vmatpush2.msra.mxu0 0.0
        %1618 = vmatprep.subr.mxu0 0.0
        %1619 = vmatpush2.msra.mxu0 0.0
        %1620 = vmatprep.subr.mxu0 0.0
        %1621 = vmatpush2.msra.mxu0 0.0
        %1622 = vmatprep.subr.mxu0 0.0
        %1623 = vmatpush2.msra.mxu0 0.0
        %1624 = vmatprep.subr.mxu0 0.0
        %1625 = vmatpush2.msra.mxu0 0.0
        %1626 = vmatprep.subr.mxu0 0.0
        %1627 = vmatpush2.msra.mxu0 0.0
        %1628 = vmatprep.subr.mxu0 0.0
        %1629 = vmatpush2.msra.mxu0 0.0
        %1630 = vmatprep.subr.mxu0 0.0
        %1631 = vmatpush2.msra.mxu0 0.0
        %1632 = vmatprep.subr.mxu0 0.0
        %1633 = vmatpush2.msra.mxu0 0.0
        %1634 = vmatprep.subr.mxu0 0.0
        %1635 = vmatpush2.msra.mxu0 0.0
        %1636 = vmatprep.mubr.f32.mxu0 0.0
        %1637 = vmatmul.mubr.f32.gmra.mxu0 %v1429
        %v1638 = vpop.f32.mrf.mxu0
        %v1639 = vadd.f32 0.0, %v1638
        %v1640 = vpop.f32.mrf.mxu0
        %v1641 = vadd.f32 0.0, %v1640
        %1642 = vdwg.mxu0
        %v1643 = vadd.f32 %v1433, %v1568
        %v1644 = vadd.f32 %v1434, %v1570
        %v1645 = vadd.f32 %v1435, %v1639
        %v1646 = vadd.f32 %v1436, %v1641
        %v1647 = vxor.u32 %v1643, 2147483648
        %v1648 = vmul.f32 %v1647, 1.442695
        %v1649 = vpow.pop %v1648
        %v1650 = vadd.f32 %v1649, 1.0
        %v1651 = vrcp.pop %v1650
        %v1652 = vmul.f32 1.0, %v1651
        %v1653 = vxor.u32 %v1644, 2147483648
        %v1654 = vmul.f32 %v1653, 1.442695
        %v1655 = vpow.pop %v1654
        %v1656 = vadd.f32 %v1655, 1.0
        %v1657 = vrcp.pop %v1656
        %v1658 = vmul.f32 1.0, %v1657
        %v1659 = vtanh.pop %v1645
        %v1660 = vxor.u32 %v1646, 2147483648
        %v1661 = vmul.f32 %v1660, 1.442695
        %v1662 = vpow.pop %v1661
        %v1663 = vadd.f32 %v1662, 1.0
        %v1664 = vrcp.pop %v1663
        %v1665 = vmul.f32 1.0, %v1664
        %v1666 = vmul.f32 %v1658, %v1427
        %v1667 = vmul.f32 %v1652, %v1659
        %v1668 = vadd.f32 %v1666, %v1667
        %v1669 = vtanh.pop %v1668
        %v1670 = vmul.f32 %v1665, %v1669
        %s1671 = scalar_lea.vmem %s410, 24 [#allocation14]
        %1672 = vst [vmem:[%s1671] sm:$0xff] %v1670
        %1673 = vst [vmem:[#allocation2] sm:$0xff] %v1670
        %1674 = vst [vmem:[#allocation3] sm:$0xff] %v1668
        %1675 = vst [vmem:[#allocation15] sm:$0xff] %v1670
        %1676 = vst [vmem:[#allocation17] sm:$0xff] %v1668
        %s1677 = sand.u32 %s194, 1
        %s1678 = scalar_lea.sflag [#allocation7], %s1677
        %s1679 = sand.u32 %s194, 1
        %s1680 = smul.addr %s1679, 32
        %s1681 = scalar_lea.vmem [#allocation14], %s1680
        // Predicated region
        $region69: #{tpu_custom_call.1} parent=43 // pred_check
          %p1682 = pneg %p204
        $region70: #{tpu_custom_call.1} parent=43 // pred_check_branch
          %1684 = sbr.rel (%p1682) target = $region72
        $region71: #{tpu_custom_call.1} parent=43 // pred_region
          %s1685 = smul.u32 4, %s34
          %s1687 = ssub.s32 512, 512
          %1688 = vsyncadd %s1678, %s1687
          %s1689 = sadd.s32 %s33, %s1685
          %s1690 = smul.addr %s1689, 128
          %s1691 = scalar_lea.hbm %s6, %s1690
          %s1692 = sshll.u32 %s1681, 4
          %s1693 = int_to_ptr.vmem [resolvable:$true] %s1692
          %1698 = dma.vmem_to_hbm [thread:$0]  %s1693, 512, %s1691, %s1678, 128, 128, 8
        $region72: #{tpu_custom_call.1} parent=43 // pred_fallthru
          _
        // Predicated region
        $region73: #{tpu_custom_call.1} parent=43 // pred_check
          %p1699 = pneg %p230
        $region74: #{tpu_custom_call.1} parent=43 // pred_check_branch
          %1701 = sbr.rel (%p1699) target = $region76
        $region75: #{tpu_custom_call.1} parent=43 // pred_region
          %s1703 = ssub.s32 128, 128
          %1704 = vsyncadd [#allocation16], %s1703
          %s1705 = smul.addr %s33, 128
          %s1706 = scalar_lea.hbm %s7, %s1705
          %s1708 = sshll.u32 [#allocation15], 4
          %s1709 = int_to_ptr.vmem [resolvable:$true] %s1708
          %1711 = dma.vmem_to_hbm [thread:$0]  %s1709, 128, %s1706, [#allocation16]
        $region76: #{tpu_custom_call.1} parent=43 // pred_fallthru
          _
        // Predicated region
        $region77: #{tpu_custom_call.1} parent=43 // pred_check
          %p1712 = pneg %p256
        $region78: #{tpu_custom_call.1} parent=43 // pred_check_branch
          %1714 = sbr.rel (%p1712) target = $region80
        $region79: #{tpu_custom_call.1} parent=43 // pred_region
          %s1716 = ssub.s32 128, 128
          %1717 = vsyncadd [#allocation16], %s1716
          %s1718 = smul.addr %s33, 128
          %s1719 = scalar_lea.hbm %s8, %s1718
          %s1721 = sshll.u32 [#allocation17], 4
          %s1722 = int_to_ptr.vmem [resolvable:$true] %s1721
          %1724 = dma.vmem_to_hbm [thread:$0]  %s1722, 128, %s1719, [#allocation16]
        $region80: #{tpu_custom_call.1} parent=43 // pred_fallthru
          _
        // Predicated region
        $region81: #{tpu_custom_call.1} parent=43 // pred_check
          %p1725 = pneg %p230
        $region82: #{tpu_custom_call.1} parent=43 // pred_check_branch
          %1727 = sbr.rel (%p1725) target = $region84
        $region83: #{tpu_custom_call.1} parent=43 // pred_region
          %1728 = dma.done [#allocation16], 128
        $region84: #{tpu_custom_call.1} parent=43 // pred_fallthru
          _
        // Predicated region
        $region85: #{tpu_custom_call.1} parent=43 // pred_check
          %p1729 = pneg %p256
        $region86: #{tpu_custom_call.1} parent=43 // pred_check_branch
          %1731 = sbr.rel (%p1729) target = $region88
        $region87: #{tpu_custom_call.1} parent=43 // pred_region
          %1732 = dma.done [#allocation16], 128
        $region88: #{tpu_custom_call.1} parent=43 // pred_fallthru
          _
      $region44: #{tpu_custom_call.1} parent=5 // pred_fallthru
        _
      %p1733 = scmp.le.s32.totalorder 2, %s24
      // Predicated region
      $region89: #{tpu_custom_call.1} parent=5 // pred_check
        %p1734 = pneg %p1733
      $region90: #{tpu_custom_call.1} parent=5 // pred_check_branch
        %1736 = sbr.rel (%p1734) target = $region92
      $region91: #{tpu_custom_call.1} parent=5 // pred_region
        %s1737 = ssub.s32 %s24, 2
        // Predicated region
        $region93: #{tpu_custom_call.1} parent=91 // pred_check
          %p1738 = pneg %p210
        $region94: #{tpu_custom_call.1} parent=91 // pred_check_branch
          %1740 = sbr.rel (%p1738) target = $region96
        $region95: #{tpu_custom_call.1} parent=91 // pred_region
          %s1741 = sand.u32 %s195, 1
          %s1742 = scalar_lea.sflag [#allocation7], %s1741
          %s1743 = sand.u32 %s195, 1
          %s1744 = smul.addr %s1743, 32
          %s1745 = scalar_lea.vmem [#allocation14], %s1744
          %1746 = dma.done %s1742, 512
        $region96: #{tpu_custom_call.1} parent=91 // pred_fallthru
          _
      $region92: #{tpu_custom_call.1} parent=5 // pred_fallthru
        _
    $region6: #{tpu_custom_call.1} parent=1 // loop_footer
      %s28 = sadd.s32 1, %s24
    $region7: #{tpu_custom_call.1} parent=1 // loop_footer_branch
      %23 = sbr.rel target = $region3
    $region8: #{tpu_custom_call.1} parent=1 // loop_exit
      _
    %1747 = vsyncpa [#allocation6], 1
    %s1748 = scalar_lea.sflag [#allocation6], 1
    %1749 = vsyncpa %s1748, 1
    %1750 = vsyncpa [#allocation9], 1
    %1751 = vsyncpa [#allocation12], 1
    %1752 = vsyncpa [#allocation7], 1
    %s1753 = scalar_lea.sflag [#allocation7], 1
    %1754 = vsyncpa %s1753, 1
    %1755 = vsyncpa [#allocation16], 1

</llo_original>
